<compile_context>
chip_gen: v7x
topology: tpu7x:2x2x1
jax: 0.10.0
libtpu: 0.0.40
codegen_flags: <defaults>
</compile_context>

<pallas_src>
import jax
import jax.numpy as jnp
from jax.experimental import pallas as pl
from jax.experimental.pallas import tpu as pltpu


def _gru_decode_kernel(
    ctx_ref,                     # (Tt, Bb, C)  f32
    dist_ref,                    # (Tt, Bb, 1)  f32
    wi_ctx_ref,                  # (C, 3H)      bf16  (fused r|z|n input weights, ctx rows)
    wi_dist_ref,                 # (1, 3H)      f32   (input-weight row for the dist channel)
    wh_ref,                      # (H, 3H)      bf16  (fused r|z|n hidden weights)
    bi_ref, bh_ref,              # (1, 3H)      f32
    w1_ref, b1_ref,              # (H, H) bf16, (1, H) f32
    w2_ref, b2_ref,              # (H, K) bf16, (1, K) f32
    o_ref,                       # (Tt, Bb, K)  f32
    h_ref,                       # scratch (Bb, H)      f32  carried hidden state
    hs_ref,                      # scratch (Tt, Bb, H)  f32  hidden states of this chunk
):
    c = pl.program_id(1)         # time-chunk index (carried axis)

    @pl.when(c == 0)
    def _():
        h_ref[...] = jnp.zeros_like(h_ref)

    f32 = jnp.float32
    bf16 = jnp.bfloat16
    Tt, Bb, H = hs_ref.shape

    # Weights are grid-constant; load once per grid step.
    wi_ctx = wi_ctx_ref[...]
    wi_dist = wi_dist_ref[...]
    wh = wh_ref[...]
    bi = bi_ref[...]
    bh = bh_ref[...]

    def step(i, carry):
        ctx_t = ctx_ref[i]                       # (Bb, C)  f32
        dist_t = dist_ref[i]                     # (Bb, 1)  f32
        h = h_ref[...]                           # (Bb, H)  f32

        # Fused input-path gates: MXU matmul for context + VPU broadcast for dist.
        gx = (jnp.dot(ctx_t.astype(bf16), wi_ctx, preferred_element_type=f32)
              + dist_t * wi_dist + bi)           # (Bb, 3H) f32
        # Fused hidden-path gates.
        gh = jnp.dot(h.astype(bf16), wh, preferred_element_type=f32) + bh

        r = jax.nn.sigmoid(gx[:, 0:H] + gh[:, 0:H])
        z = jax.nn.sigmoid(gx[:, H:2 * H] + gh[:, H:2 * H])
        n = jnp.tanh(gx[:, 2 * H:3 * H] + r * gh[:, 2 * H:3 * H])
        h_new = (1.0 - z) * n + z * h            # f32 recurrence
        h_ref[...] = h_new
        hs_ref[i] = h_new
        return carry

    jax.lax.fori_loop(0, Tt, step, 0, unroll=True)

    # Decode head (Dropout=identity -> Linear -> ReLU -> Linear) applied to the
    # whole chunk at once -- off the serial recurrence chain, one big matmul.
    hs = hs_ref[...].reshape(Tt * Bb, H)
    d1 = jnp.maximum(
        jnp.dot(hs.astype(bf16), w1_ref[...], preferred_element_type=f32)
        + b1_ref[...], 0.0)
    d2 = (jnp.dot(d1.astype(bf16), w2_ref[...], preferred_element_type=f32)
          + b2_ref[...])
    K = d2.shape[-1]
    pred = d2.reshape(Tt, Bb, K) * 0.5
    # last_dist residual (broadcast over K); single coalesced store per chunk.
    o_ref[...] = pred + dist_ref[...]


def rnn_forward(dist_seq, context_seq, params, *, max_time_chunk=32):
    """dist_seq: (B, T) f32, context_seq: (B, T, C) f32 -> (B, T, K) f32."""
    B, T = dist_seq.shape
    C = context_seq.shape[-1]
    H = params["wh"].shape[0]
    K = params["w2"].shape[1]

    # Time-major inputs (dist kept as its own (T,B,1) channel: no concat pass).
    ctx_tm = jnp.transpose(context_seq.astype(jnp.float32), (1, 0, 2))   # (T,B,C)
    dist_tm = jnp.transpose(dist_seq.astype(jnp.float32), (1, 0))[..., None]  # (T,B,1)

    # Largest divisor of T that is <= max_time_chunk (demo: Tt = T = 8).
    Tt = 1
    for d in range(1, min(T, max_time_chunk) + 1):
        if T % d == 0:
            Tt = d
    nt = T // Tt

    # Batch-parallel axis (v7x megacore): only split if blocks stay (8,128)-legal.
    if B % 16 == 0:
        Bb = B // 2
    else:
        Bb = B
    nb = B // Bb

    weight_order = ["wi_ctx", "wi_dist", "wh", "bi", "bh", "w1", "b1", "w2", "b2"]
    weights = [params[k] for k in weight_order]

    def wspec(arr):
        nd = arr.ndim
        # NOTE: constant-index weight blocks could be single-buffered via
        # pipeline_mode=pl.Buffered(1) to halve resident VMEM on v7x.
        return pl.BlockSpec(arr.shape, lambda b, c, _nd=nd: (0,) * _nd)

    in_specs = [
        pl.BlockSpec((Tt, Bb, C), lambda b, c: (c, b, 0)),
        pl.BlockSpec((Tt, Bb, 1), lambda b, c: (c, b, 0)),
    ] + [wspec(w) for w in weights]

    out_tm = pl.pallas_call(
        _gru_decode_kernel,
        out_shape=jax.ShapeDtypeStruct((T, B, K), jnp.float32),
        grid_spec=pltpu.PrefetchScalarGridSpec(
            num_scalar_prefetch=0,
            grid=(nb, nt),                      # batch blocks (parallel), time chunks (carried)
            in_specs=in_specs,
            out_specs=pl.BlockSpec((Tt, Bb, K), lambda b, c: (c, b, 0)),
            scratch_shapes=[
                pltpu.VMEM((Bb, H), jnp.float32),       # carried hidden state
                pltpu.VMEM((Tt, Bb, H), jnp.float32),   # hidden states of the chunk
            ],
        ),
        compiler_params=pltpu.CompilerParams(
            dimension_semantics=("parallel", "arbitrary"),
            vmem_limit_bytes=48 * 1024 * 1024,
        ),
    )(ctx_tm, dist_tm, *weights)

    return jnp.transpose(out_tm, (1, 0, 2))    # (B, T, K)


def init_params(key, context_size, latent_size, horizon_K):
    """Deterministic synthetic parameters (PyTorch-like scales), gate order r|z|n.

    MXU-path weights are stored in bf16 (f32 accumulation in-kernel); the dist
    weight row and all biases stay f32.
    """
    C, H, K = context_size, latent_size, horizon_K
    I = C + 1
    ks = jax.random.split(key, 12)
    s = 1.0 / jnp.sqrt(H)

    def u(k, shape):
        return jax.random.uniform(k, shape, jnp.float32, -s, s)

    def xavier(k, fan_in, fan_out):
        lim = jnp.sqrt(6.0 / (fan_in + fan_out))
        return jax.random.uniform(k, (fan_in, fan_out), jnp.float32, -lim, lim)

    # Fused GRU weights (stored transposed), gate order r|z|n along the 3H axis.
    # NOTE: for best MXU occupancy pick H so 3H is a multiple of 128 (v5e) / 256
    # (v6e/v7x); not enforced here.
    w_i = jnp.concatenate([u(ks[0], (I, H)), u(ks[1], (I, H)), u(ks[2], (I, H))], axis=1)  # (I, 3H)
    w_h = jnp.concatenate([u(ks[3], (H, H)), u(ks[4], (H, H)), u(ks[5], (H, H))], axis=1)  # (H, 3H)
    b_i = jnp.concatenate([u(ks[6], (1, H)), u(ks[7], (1, H)), u(ks[8], (1, H))], axis=1)  # (1, 3H)
    b_h = jnp.concatenate([u(ks[9], (1, H)), u(ks[10], (1, H)), u(ks[11], (1, H))], axis=1)

    k1, k2 = jax.random.split(jax.random.fold_in(key, 123))
    return {
        "wi_ctx": w_i[:C].astype(jnp.bfloat16),     # (C, 3H)  MXU path
        "wi_dist": w_i[C:C + 1],                    # (1, 3H)  VPU path, f32
        "wh": w_h.astype(jnp.bfloat16),             # (H, 3H)
        "bi": b_i, "bh": b_h,                       # (1, 3H)  f32
        "w1": xavier(k1, H, H).astype(jnp.bfloat16),
        "b1": jnp.zeros((1, H), jnp.float32),
        "w2": xavier(k2, H, K).astype(jnp.bfloat16),
        "b2": jnp.zeros((1, K), jnp.float32),
    }


def rnn_forward_reference(dist_seq, context_seq, params):
    """Pure-JAX reference of the same forward pass (same bf16/f32 mix)."""
    f32, bf16 = jnp.float32, jnp.bfloat16
    B, T = dist_seq.shape
    H = params["wh"].shape[0]
    ctx = context_seq.astype(f32)
    dist = dist_seq.astype(f32)[..., None]          # (B, T, 1)

    wi_ctx, wi_dist = params["wi_ctx"], params["wi_dist"]
    wh, bi, bh = params["wh"], params["bi"], params["bh"]

    def step(h, xs):
        ctx_t, dist_t = xs                          # (B, C), (B, 1)
        gx = (jnp.dot(ctx_t.astype(bf16), wi_ctx, preferred_element_type=f32)
              + dist_t * wi_dist + bi)
        gh = jnp.dot(h.astype(bf16), wh, preferred_element_type=f32) + bh
        r = jax.nn.sigmoid(gx[:, 0:H] + gh[:, 0:H])
        z = jax.nn.sigmoid(gx[:, H:2 * H] + gh[:, H:2 * H])
        n = jnp.tanh(gx[:, 2 * H:3 * H] + r * gh[:, 2 * H:3 * H])
        h_new = (1.0 - z) * n + z * h
        return h_new, h_new

    h0 = jnp.zeros((B, H), f32)
    _, hs = jax.lax.scan(
        step, h0, (jnp.transpose(ctx, (1, 0, 2)), jnp.transpose(dist, (1, 0, 2))))
    rnn_out = jnp.transpose(hs, (1, 0, 2))          # (B, T, H)
    d1 = jnp.maximum(
        jnp.dot(rnn_out.astype(bf16), params["w1"], preferred_element_type=f32)
        + params["b1"], 0.0)
    d2 = (jnp.dot(d1.astype(bf16), params["w2"], preferred_element_type=f32)
          + params["b2"])
    return d2 * 0.5 + dist


if __name__ == "__main__":
    # hyper_params: context_size=4, latent_size=32, horizon=True, horizon_K=4
    B, T, C, H, K = 2, 8, 4, 32, 4

    key = jax.random.PRNGKey(0)
    k_d, k_c, k_p = jax.random.split(key, 3)
    dist_seq = jax.random.normal(k_d, (B, T), jnp.float32)
    context_seq = jax.random.normal(k_c, (B, T, C), jnp.float32)
    params = init_params(k_p, context_size=C, latent_size=H, horizon_K=K)

    out = jax.block_until_ready(rnn_forward(dist_seq, context_seq, params))
    ref = jax.block_until_ready(rnn_forward_reference(dist_seq, context_seq, params))

    assert out.shape == (B, T, K), out.shape
    max_err = float(jnp.max(jnp.abs(out - ref)))
    assert jnp.allclose(out, ref, rtol=1e-3, atol=1e-3), max_err
    print("KERNEL_OK")
</pallas_src>

<mosaic_0001>
module attributes {stable_mosaic.version = 11 : i64} {
  func.func @_gru_decode_kernel(%arg0: i32, %arg1: i32, %arg2: memref<8x2x4xf32, #tpu.memory_space<vmem>>, %arg3: memref<8x2x1xf32, #tpu.memory_space<vmem>>, %arg4: memref<4x96xbf16, #tpu.memory_space<vmem>>, %arg5: memref<1x96xf32, #tpu.memory_space<vmem>>, %arg6: memref<32x96xbf16, #tpu.memory_space<vmem>>, %arg7: memref<1x96xf32, #tpu.memory_space<vmem>>, %arg8: memref<1x96xf32, #tpu.memory_space<vmem>>, %arg9: memref<32x32xbf16, #tpu.memory_space<vmem>>, %arg10: memref<1x32xf32, #tpu.memory_space<vmem>>, %arg11: memref<32x4xbf16, #tpu.memory_space<vmem>>, %arg12: memref<1x4xf32, #tpu.memory_space<vmem>>, %arg13: memref<8x2x4xf32, #tpu.memory_space<vmem>>, %arg14: memref<2x32xf32, #tpu.memory_space<vmem>>, %arg15: memref<8x2x32xf32, #tpu.memory_space<vmem>>) attributes {dimension_semantics = [#tpu.dimension_semantics<parallel>, #tpu.dimension_semantics<arbitrary>], iteration_bounds = array<i64: 1, 1>, scalar_prefetch = 0 : i64, scratch_operands = 2 : i64, tpu.core_type = #tpu.core_type<tc>, window_params = [{transform_indices = @transform_0, window_bounds = array<i64: 8, 2, 4>}, {transform_indices = @transform_1, window_bounds = array<i64: 8, 2, 1>}, {pipeline_mode = #tpu.pipeline_mode<synchronous>, transform_indices = @transform_2, window_bounds = array<i64: 4, 96>}, {pipeline_mode = #tpu.pipeline_mode<synchronous>, transform_indices = @transform_3, window_bounds = array<i64: 1, 96>}, {pipeline_mode = #tpu.pipeline_mode<synchronous>, transform_indices = @transform_4, window_bounds = array<i64: 32, 96>}, {pipeline_mode = #tpu.pipeline_mode<synchronous>, transform_indices = @transform_5, window_bounds = array<i64: 1, 96>}, {pipeline_mode = #tpu.pipeline_mode<synchronous>, transform_indices = @transform_6, window_bounds = array<i64: 1, 96>}, {pipeline_mode = #tpu.pipeline_mode<synchronous>, transform_indices = @transform_7, window_bounds = array<i64: 32, 32>}, {pipeline_mode = #tpu.pipeline_mode<synchronous>, transform_indices = @transform_8, window_bounds = array<i64: 1, 32>}, {pipeline_mode = #tpu.pipeline_mode<synchronous>, transform_indices = @transform_9, window_bounds = array<i64: 32, 4>}, {pipeline_mode = #tpu.pipeline_mode<synchronous>, transform_indices = @transform_10, window_bounds = array<i64: 1, 4>}, {transform_indices = @transform_11, window_bounds = array<i64: 8, 2, 4>}]} {
    %c0_i32 = arith.constant 0 : i32
    %0 = arith.cmpi eq, %arg1, %c0_i32 : i32
    %1 = arith.extui %0 : i1 to i32
    %c0_i32_0 = arith.constant 0 : i32
    %2 = arith.cmpi ne, %1, %c0_i32_0 : i32
    scf.if %2 {
      %cst_151 = arith.constant 0.000000e+00 : f32
      %431 = vector.broadcast %cst_151 : f32 to vector<2x32xf32>
      %c0_152 = arith.constant 0 : index
      %c0_153 = arith.constant 0 : index
      %432 = vector.load %arg14[%c0_152, %c0_153] : memref<2x32xf32, #tpu.memory_space<vmem>>, vector<2x32xf32>
      tpu.vector_store %arg14[%c0_152, %c0_153], %431 {strides = array<i32>} : memref<2x32xf32, #tpu.memory_space<vmem>>, vector<2x32xf32>,
    } else {
    }
    %c0 = arith.constant 0 : index
    %c0_1 = arith.constant 0 : index
    %3 = vector.load %arg4[%c0, %c0_1] : memref<4x96xbf16, #tpu.memory_space<vmem>>, vector<4x96xbf16>
    %c0_2 = arith.constant 0 : index
    %c0_3 = arith.constant 0 : index
    %4 = vector.load %arg5[%c0_2, %c0_3] : memref<1x96xf32, #tpu.memory_space<vmem>>, vector<1x96xf32>
    %c0_4 = arith.constant 0 : index
    %c0_5 = arith.constant 0 : index
    %5 = vector.load %arg6[%c0_4, %c0_5] : memref<32x96xbf16, #tpu.memory_space<vmem>>, vector<32x96xbf16>
    %c0_6 = arith.constant 0 : index
    %c0_7 = arith.constant 0 : index
    %6 = vector.load %arg7[%c0_6, %c0_7] : memref<1x96xf32, #tpu.memory_space<vmem>>, vector<1x96xf32>
    %c0_8 = arith.constant 0 : index
    %c0_9 = arith.constant 0 : index
    %7 = vector.load %arg8[%c0_8, %c0_9] : memref<1x96xf32, #tpu.memory_space<vmem>>, vector<1x96xf32>
    %c0_i32_10 = arith.constant 0 : i32
    %8 = arith.index_cast %c0_i32_10 : i32 to index
    %c0_11 = arith.constant 0 : index
    %c0_12 = arith.constant 0 : index
    %9 = vector.load %arg2[%8, %c0_11, %c0_12] : memref<8x2x4xf32, #tpu.memory_space<vmem>>, vector<1x2x4xf32>
    %10 = vector.shape_cast %9 : vector<1x2x4xf32> to vector<2x4xf32>
    %11 = arith.index_cast %c0_i32_10 : i32 to index
    %c0_13 = arith.constant 0 : index
    %c0_14 = arith.constant 0 : index
    %12 = vector.load %arg3[%11, %c0_13, %c0_14] : memref<8x2x1xf32, #tpu.memory_space<vmem>>, vector<1x2x1xf32>
    %13 = vector.shape_cast %12 : vector<1x2x1xf32> to vector<2x1xf32>
    %c0_15 = arith.constant 0 : index
    %c0_16 = arith.constant 0 : index
    %14 = vector.load %arg14[%c0_15, %c0_16] : memref<2x32xf32, #tpu.memory_space<vmem>>, vector<2x32xf32>
    %15 = arith.truncf %10 : vector<2x4xf32> to vector<2x4xbf16>
    %cst = arith.constant dense<0.000000e+00> : vector<2x96xf32>
    %16 = tpu.matmul %15, %3, %cst {dimension_numbers = #tpu.dot_dimension_numbers<[1], [0], [0], [1], [0, 0, 1, 1], [], []>} : vector<2x4xbf16>, vector<4x96xbf16>, vector<2x96xf32> -> vector<2x96xf32>
    %17 = vector.broadcast %13 : vector<2x1xf32> to vector<2x96xf32>
    %18 = vector.broadcast %4 : vector<1x96xf32> to vector<2x96xf32>
    %19 = arith.mulf %17, %18 : vector<2x96xf32>
    %20 = arith.addf %16, %19 : vector<2x96xf32>
    %21 = vector.broadcast %6 : vector<1x96xf32> to vector<2x96xf32>
    %22 = arith.addf %20, %21 : vector<2x96xf32>
    %23 = arith.truncf %14 : vector<2x32xf32> to vector<2x32xbf16>
    %cst_17 = arith.constant dense<0.000000e+00> : vector<2x96xf32>
    %24 = tpu.matmul %23, %5, %cst_17 {dimension_numbers = #tpu.dot_dimension_numbers<[1], [0], [0], [1], [0, 0, 1, 1], [], []>} : vector<2x32xbf16>, vector<32x96xbf16>, vector<2x96xf32> -> vector<2x96xf32>
    %25 = vector.broadcast %7 : vector<1x96xf32> to vector<2x96xf32>
    %26 = arith.addf %24, %25 : vector<2x96xf32>
    %27 = vector.extract_strided_slice %22 {offsets = [0, 0], sizes = [2, 32], strides = [1, 1]} : vector<2x96xf32> to vector<2x32xf32>
    %28 = vector.extract_strided_slice %26 {offsets = [0, 0], sizes = [2, 32], strides = [1, 1]} : vector<2x96xf32> to vector<2x32xf32>
    %29 = arith.addf %27, %28 : vector<2x32xf32>
    %30 = arith.negf %29 : vector<2x32xf32>
    %31 = math.exp %30 : vector<2x32xf32>
    %cst_18 = arith.constant 1.000000e+00 : f32
    %32 = vector.broadcast %cst_18 : f32 to vector<2x32xf32>
    %33 = arith.addf %32, %31 : vector<2x32xf32>
    %34 = arith.divf %32, %33 : vector<2x32xf32>
    %35 = vector.extract_strided_slice %22 {offsets = [0, 32], sizes = [2, 32], strides = [1, 1]} : vector<2x96xf32> to vector<2x32xf32>
    %36 = vector.extract_strided_slice %26 {offsets = [0, 32], sizes = [2, 32], strides = [1, 1]} : vector<2x96xf32> to vector<2x32xf32>
    %37 = arith.addf %35, %36 : vector<2x32xf32>
    %38 = arith.negf %37 : vector<2x32xf32>
    %39 = math.exp %38 : vector<2x32xf32>
    %cst_19 = arith.constant 1.000000e+00 : f32
    %40 = vector.broadcast %cst_19 : f32 to vector<2x32xf32>
    %41 = arith.addf %40, %39 : vector<2x32xf32>
    %42 = arith.divf %40, %41 : vector<2x32xf32>
    %43 = vector.extract_strided_slice %22 {offsets = [0, 64], sizes = [2, 32], strides = [1, 1]} : vector<2x96xf32> to vector<2x32xf32>
    %44 = vector.extract_strided_slice %26 {offsets = [0, 64], sizes = [2, 32], strides = [1, 1]} : vector<2x96xf32> to vector<2x32xf32>
    %45 = arith.mulf %34, %44 : vector<2x32xf32>
    %46 = arith.addf %43, %45 : vector<2x32xf32>
    %47 = math.tanh %46 : vector<2x32xf32>
    %cst_20 = arith.constant 1.000000e+00 : f32
    %48 = vector.broadcast %cst_20 : f32 to vector<2x32xf32>
    %49 = arith.subf %48, %42 : vector<2x32xf32>
    %50 = arith.mulf %49, %47 : vector<2x32xf32>
    %51 = arith.mulf %42, %14 : vector<2x32xf32>
    %52 = arith.addf %50, %51 : vector<2x32xf32>
    %c0_21 = arith.constant 0 : index
    %c0_22 = arith.constant 0 : index
    %53 = vector.load %arg14[%c0_21, %c0_22] : memref<2x32xf32, #tpu.memory_space<vmem>>, vector<2x32xf32>
    tpu.vector_store %arg14[%c0_21, %c0_22], %52 {strides = array<i32>} : memref<2x32xf32, #tpu.memory_space<vmem>>, vector<2x32xf32>,
    %54 = arith.index_cast %c0_i32_10 : i32 to index
    %c0_23 = arith.constant 0 : index
    %c0_24 = arith.constant 0 : index
    %55 = vector.load %arg15[%54, %c0_23, %c0_24] : memref<8x2x32xf32, #tpu.memory_space<vmem>>, vector<1x2x32xf32>
    %56 = vector.shape_cast %55 : vector<1x2x32xf32> to vector<2x32xf32>
    %57 = vector.shape_cast %52 : vector<2x32xf32> to vector<1x2x32xf32>
    tpu.vector_store %arg15[%54, %c0_23, %c0_24], %57 {strides = array<i32>} : memref<8x2x32xf32, #tpu.memory_space<vmem>>, vector<1x2x32xf32>,
    %c1_i32 = arith.constant 1 : i32
    %58 = arith.index_cast %c1_i32 : i32 to index
    %c0_25 = arith.constant 0 : index
    %c0_26 = arith.constant 0 : index
    %59 = vector.load %arg2[%58, %c0_25, %c0_26] : memref<8x2x4xf32, #tpu.memory_space<vmem>>, vector<1x2x4xf32>
    %60 = vector.shape_cast %59 : vector<1x2x4xf32> to vector<2x4xf32>
    %61 = arith.index_cast %c1_i32 : i32 to index
    %c0_27 = arith.constant 0 : index
    %c0_28 = arith.constant 0 : index
    %62 = vector.load %arg3[%61, %c0_27, %c0_28] : memref<8x2x1xf32, #tpu.memory_space<vmem>>, vector<1x2x1xf32>
    %63 = vector.shape_cast %62 : vector<1x2x1xf32> to vector<2x1xf32>
    %c0_29 = arith.constant 0 : index
    %c0_30 = arith.constant 0 : index
    %64 = vector.load %arg14[%c0_29, %c0_30] : memref<2x32xf32, #tpu.memory_space<vmem>>, vector<2x32xf32>
    %65 = arith.truncf %60 : vector<2x4xf32> to vector<2x4xbf16>
    %cst_31 = arith.constant dense<0.000000e+00> : vector<2x96xf32>
    %66 = tpu.matmul %65, %3, %cst_31 {dimension_numbers = #tpu.dot_dimension_numbers<[1], [0], [0], [1], [0, 0, 1, 1], [], []>} : vector<2x4xbf16>, vector<4x96xbf16>, vector<2x96xf32> -> vector<2x96xf32>
    %67 = vector.broadcast %63 : vector<2x1xf32> to vector<2x96xf32>
    %68 = vector.broadcast %4 : vector<1x96xf32> to vector<2x96xf32>
    %69 = arith.mulf %67, %68 : vector<2x96xf32>
    %70 = arith.addf %66, %69 : vector<2x96xf32>
    %71 = vector.broadcast %6 : vector<1x96xf32> to vector<2x96xf32>
    %72 = arith.addf %70, %71 : vector<2x96xf32>
    %73 = arith.truncf %64 : vector<2x32xf32> to vector<2x32xbf16>
    %cst_32 = arith.constant dense<0.000000e+00> : vector<2x96xf32>
    %74 = tpu.matmul %73, %5, %cst_32 {dimension_numbers = #tpu.dot_dimension_numbers<[1], [0], [0], [1], [0, 0, 1, 1], [], []>} : vector<2x32xbf16>, vector<32x96xbf16>, vector<2x96xf32> -> vector<2x96xf32>
    %75 = vector.broadcast %7 : vector<1x96xf32> to vector<2x96xf32>
    %76 = arith.addf %74, %75 : vector<2x96xf32>
    %77 = vector.extract_strided_slice %72 {offsets = [0, 0], sizes = [2, 32], strides = [1, 1]} : vector<2x96xf32> to vector<2x32xf32>
    %78 = vector.extract_strided_slice %76 {offsets = [0, 0], sizes = [2, 32], strides = [1, 1]} : vector<2x96xf32> to vector<2x32xf32>
    %79 = arith.addf %77, %78 : vector<2x32xf32>
    %80 = arith.negf %79 : vector<2x32xf32>
    %81 = math.exp %80 : vector<2x32xf32>
    %cst_33 = arith.constant 1.000000e+00 : f32
    %82 = vector.broadcast %cst_33 : f32 to vector<2x32xf32>
    %83 = arith.addf %82, %81 : vector<2x32xf32>
    %84 = arith.divf %82, %83 : vector<2x32xf32>
    %85 = vector.extract_strided_slice %72 {offsets = [0, 32], sizes = [2, 32], strides = [1, 1]} : vector<2x96xf32> to vector<2x32xf32>
    %86 = vector.extract_strided_slice %76 {offsets = [0, 32], sizes = [2, 32], strides = [1, 1]} : vector<2x96xf32> to vector<2x32xf32>
    %87 = arith.addf %85, %86 : vector<2x32xf32>
    %88 = arith.negf %87 : vector<2x32xf32>
    %89 = math.exp %88 : vector<2x32xf32>
    %cst_34 = arith.constant 1.000000e+00 : f32
    %90 = vector.broadcast %cst_34 : f32 to vector<2x32xf32>
    %91 = arith.addf %90, %89 : vector<2x32xf32>
    %92 = arith.divf %90, %91 : vector<2x32xf32>
    %93 = vector.extract_strided_slice %72 {offsets = [0, 64], sizes = [2, 32], strides = [1, 1]} : vector<2x96xf32> to vector<2x32xf32>
    %94 = vector.extract_strided_slice %76 {offsets = [0, 64], sizes = [2, 32], strides = [1, 1]} : vector<2x96xf32> to vector<2x32xf32>
    %95 = arith.mulf %84, %94 : vector<2x32xf32>
    %96 = arith.addf %93, %95 : vector<2x32xf32>
    %97 = math.tanh %96 : vector<2x32xf32>
    %cst_35 = arith.constant 1.000000e+00 : f32
    %98 = vector.broadcast %cst_35 : f32 to vector<2x32xf32>
    %99 = arith.subf %98, %92 : vector<2x32xf32>
    %100 = arith.mulf %99, %97 : vector<2x32xf32>
    %101 = arith.mulf %92, %64 : vector<2x32xf32>
    %102 = arith.addf %100, %101 : vector<2x32xf32>
    %c0_36 = arith.constant 0 : index
    %c0_37 = arith.constant 0 : index
    %103 = vector.load %arg14[%c0_36, %c0_37] : memref<2x32xf32, #tpu.memory_space<vmem>>, vector<2x32xf32>
    tpu.vector_store %arg14[%c0_36, %c0_37], %102 {strides = array<i32>} : memref<2x32xf32, #tpu.memory_space<vmem>>, vector<2x32xf32>,
    %104 = arith.index_cast %c1_i32 : i32 to index
    %c0_38 = arith.constant 0 : index
    %c0_39 = arith.constant 0 : index
    %105 = vector.load %arg15[%104, %c0_38, %c0_39] : memref<8x2x32xf32, #tpu.memory_space<vmem>>, vector<1x2x32xf32>
    %106 = vector.shape_cast %105 : vector<1x2x32xf32> to vector<2x32xf32>
    %107 = vector.shape_cast %102 : vector<2x32xf32> to vector<1x2x32xf32>
    tpu.vector_store %arg15[%104, %c0_38, %c0_39], %107 {strides = array<i32>} : memref<8x2x32xf32, #tpu.memory_space<vmem>>, vector<1x2x32xf32>,
    %c2_i32 = arith.constant 2 : i32
    %108 = arith.index_cast %c2_i32 : i32 to index
    %c0_40 = arith.constant 0 : index
    %c0_41 = arith.constant 0 : index
    %109 = vector.load %arg2[%108, %c0_40, %c0_41] : memref<8x2x4xf32, #tpu.memory_space<vmem>>, vector<1x2x4xf32>
    %110 = vector.shape_cast %109 : vector<1x2x4xf32> to vector<2x4xf32>
    %111 = arith.index_cast %c2_i32 : i32 to index
    %c0_42 = arith.constant 0 : index
    %c0_43 = arith.constant 0 : index
    %112 = vector.load %arg3[%111, %c0_42, %c0_43] : memref<8x2x1xf32, #tpu.memory_space<vmem>>, vector<1x2x1xf32>
    %113 = vector.shape_cast %112 : vector<1x2x1xf32> to vector<2x1xf32>
    %c0_44 = arith.constant 0 : index
    %c0_45 = arith.constant 0 : index
    %114 = vector.load %arg14[%c0_44, %c0_45] : memref<2x32xf32, #tpu.memory_space<vmem>>, vector<2x32xf32>
    %115 = arith.truncf %110 : vector<2x4xf32> to vector<2x4xbf16>
    %cst_46 = arith.constant dense<0.000000e+00> : vector<2x96xf32>
    %116 = tpu.matmul %115, %3, %cst_46 {dimension_numbers = #tpu.dot_dimension_numbers<[1], [0], [0], [1], [0, 0, 1, 1], [], []>} : vector<2x4xbf16>, vector<4x96xbf16>, vector<2x96xf32> -> vector<2x96xf32>
    %117 = vector.broadcast %113 : vector<2x1xf32> to vector<2x96xf32>
    %118 = vector.broadcast %4 : vector<1x96xf32> to vector<2x96xf32>
    %119 = arith.mulf %117, %118 : vector<2x96xf32>
    %120 = arith.addf %116, %119 : vector<2x96xf32>
    %121 = vector.broadcast %6 : vector<1x96xf32> to vector<2x96xf32>
    %122 = arith.addf %120, %121 : vector<2x96xf32>
    %123 = arith.truncf %114 : vector<2x32xf32> to vector<2x32xbf16>
    %cst_47 = arith.constant dense<0.000000e+00> : vector<2x96xf32>
    %124 = tpu.matmul %123, %5, %cst_47 {dimension_numbers = #tpu.dot_dimension_numbers<[1], [0], [0], [1], [0, 0, 1, 1], [], []>} : vector<2x32xbf16>, vector<32x96xbf16>, vector<2x96xf32> -> vector<2x96xf32>
    %125 = vector.broadcast %7 : vector<1x96xf32> to vector<2x96xf32>
    %126 = arith.addf %124, %125 : vector<2x96xf32>
    %127 = vector.extract_strided_slice %122 {offsets = [0, 0], sizes = [2, 32], strides = [1, 1]} : vector<2x96xf32> to vector<2x32xf32>
    %128 = vector.extract_strided_slice %126 {offsets = [0, 0], sizes = [2, 32], strides = [1, 1]} : vector<2x96xf32> to vector<2x32xf32>
    %129 = arith.addf %127, %128 : vector<2x32xf32>
    %130 = arith.negf %129 : vector<2x32xf32>
    %131 = math.exp %130 : vector<2x32xf32>
    %cst_48 = arith.constant 1.000000e+00 : f32
    %132 = vector.broadcast %cst_48 : f32 to vector<2x32xf32>
    %133 = arith.addf %132, %131 : vector<2x32xf32>
    %134 = arith.divf %132, %133 : vector<2x32xf32>
    %135 = vector.extract_strided_slice %122 {offsets = [0, 32], sizes = [2, 32], strides = [1, 1]} : vector<2x96xf32> to vector<2x32xf32>
    %136 = vector.extract_strided_slice %126 {offsets = [0, 32], sizes = [2, 32], strides = [1, 1]} : vector<2x96xf32> to vector<2x32xf32>
    %137 = arith.addf %135, %136 : vector<2x32xf32>
    %138 = arith.negf %137 : vector<2x32xf32>
    %139 = math.exp %138 : vector<2x32xf32>
    %cst_49 = arith.constant 1.000000e+00 : f32
    %140 = vector.broadcast %cst_49 : f32 to vector<2x32xf32>
    %141 = arith.addf %140, %139 : vector<2x32xf32>
    %142 = arith.divf %140, %141 : vector<2x32xf32>
    %143 = vector.extract_strided_slice %122 {offsets = [0, 64], sizes = [2, 32], strides = [1, 1]} : vector<2x96xf32> to vector<2x32xf32>
    %144 = vector.extract_strided_slice %126 {offsets = [0, 64], sizes = [2, 32], strides = [1, 1]} : vector<2x96xf32> to vector<2x32xf32>
    %145 = arith.mulf %134, %144 : vector<2x32xf32>
    %146 = arith.addf %143, %145 : vector<2x32xf32>
    %147 = math.tanh %146 : vector<2x32xf32>
    %cst_50 = arith.constant 1.000000e+00 : f32
    %148 = vector.broadcast %cst_50 : f32 to vector<2x32xf32>
    %149 = arith.subf %148, %142 : vector<2x32xf32>
    %150 = arith.mulf %149, %147 : vector<2x32xf32>
    %151 = arith.mulf %142, %114 : vector<2x32xf32>
    %152 = arith.addf %150, %151 : vector<2x32xf32>
    %c0_51 = arith.constant 0 : index
    %c0_52 = arith.constant 0 : index
    %153 = vector.load %arg14[%c0_51, %c0_52] : memref<2x32xf32, #tpu.memory_space<vmem>>, vector<2x32xf32>
    tpu.vector_store %arg14[%c0_51, %c0_52], %152 {strides = array<i32>} : memref<2x32xf32, #tpu.memory_space<vmem>>, vector<2x32xf32>,
    %154 = arith.index_cast %c2_i32 : i32 to index
    %c0_53 = arith.constant 0 : index
    %c0_54 = arith.constant 0 : index
    %155 = vector.load %arg15[%154, %c0_53, %c0_54] : memref<8x2x32xf32, #tpu.memory_space<vmem>>, vector<1x2x32xf32>
    %156 = vector.shape_cast %155 : vector<1x2x32xf32> to vector<2x32xf32>
    %157 = vector.shape_cast %152 : vector<2x32xf32> to vector<1x2x32xf32>
    tpu.vector_store %arg15[%154, %c0_53, %c0_54], %157 {strides = array<i32>} : memref<8x2x32xf32, #tpu.memory_space<vmem>>, vector<1x2x32xf32>,
    %c3_i32 = arith.constant 3 : i32
    %158 = arith.index_cast %c3_i32 : i32 to index
    %c0_55 = arith.constant 0 : index
    %c0_56 = arith.constant 0 : index
    %159 = vector.load %arg2[%158, %c0_55, %c0_56] : memref<8x2x4xf32, #tpu.memory_space<vmem>>, vector<1x2x4xf32>
    %160 = vector.shape_cast %159 : vector<1x2x4xf32> to vector<2x4xf32>
    %161 = arith.index_cast %c3_i32 : i32 to index
    %c0_57 = arith.constant 0 : index
    %c0_58 = arith.constant 0 : index
    %162 = vector.load %arg3[%161, %c0_57, %c0_58] : memref<8x2x1xf32, #tpu.memory_space<vmem>>, vector<1x2x1xf32>
    %163 = vector.shape_cast %162 : vector<1x2x1xf32> to vector<2x1xf32>
    %c0_59 = arith.constant 0 : index
    %c0_60 = arith.constant 0 : index
    %164 = vector.load %arg14[%c0_59, %c0_60] : memref<2x32xf32, #tpu.memory_space<vmem>>, vector<2x32xf32>
    %165 = arith.truncf %160 : vector<2x4xf32> to vector<2x4xbf16>
    %cst_61 = arith.constant dense<0.000000e+00> : vector<2x96xf32>
    %166 = tpu.matmul %165, %3, %cst_61 {dimension_numbers = #tpu.dot_dimension_numbers<[1], [0], [0], [1], [0, 0, 1, 1], [], []>} : vector<2x4xbf16>, vector<4x96xbf16>, vector<2x96xf32> -> vector<2x96xf32>
    %167 = vector.broadcast %163 : vector<2x1xf32> to vector<2x96xf32>
    %168 = vector.broadcast %4 : vector<1x96xf32> to vector<2x96xf32>
    %169 = arith.mulf %167, %168 : vector<2x96xf32>
    %170 = arith.addf %166, %169 : vector<2x96xf32>
    %171 = vector.broadcast %6 : vector<1x96xf32> to vector<2x96xf32>
    %172 = arith.addf %170, %171 : vector<2x96xf32>
    %173 = arith.truncf %164 : vector<2x32xf32> to vector<2x32xbf16>
    %cst_62 = arith.constant dense<0.000000e+00> : vector<2x96xf32>
    %174 = tpu.matmul %173, %5, %cst_62 {dimension_numbers = #tpu.dot_dimension_numbers<[1], [0], [0], [1], [0, 0, 1, 1], [], []>} : vector<2x32xbf16>, vector<32x96xbf16>, vector<2x96xf32> -> vector<2x96xf32>
    %175 = vector.broadcast %7 : vector<1x96xf32> to vector<2x96xf32>
    %176 = arith.addf %174, %175 : vector<2x96xf32>
    %177 = vector.extract_strided_slice %172 {offsets = [0, 0], sizes = [2, 32], strides = [1, 1]} : vector<2x96xf32> to vector<2x32xf32>
    %178 = vector.extract_strided_slice %176 {offsets = [0, 0], sizes = [2, 32], strides = [1, 1]} : vector<2x96xf32> to vector<2x32xf32>
    %179 = arith.addf %177, %178 : vector<2x32xf32>
    %180 = arith.negf %179 : vector<2x32xf32>
    %181 = math.exp %180 : vector<2x32xf32>
    %cst_63 = arith.constant 1.000000e+00 : f32
    %182 = vector.broadcast %cst_63 : f32 to vector<2x32xf32>
    %183 = arith.addf %182, %181 : vector<2x32xf32>
    %184 = arith.divf %182, %183 : vector<2x32xf32>
    %185 = vector.extract_strided_slice %172 {offsets = [0, 32], sizes = [2, 32], strides = [1, 1]} : vector<2x96xf32> to vector<2x32xf32>
    %186 = vector.extract_strided_slice %176 {offsets = [0, 32], sizes = [2, 32], strides = [1, 1]} : vector<2x96xf32> to vector<2x32xf32>
    %187 = arith.addf %185, %186 : vector<2x32xf32>
    %188 = arith.negf %187 : vector<2x32xf32>
    %189 = math.exp %188 : vector<2x32xf32>
    %cst_64 = arith.constant 1.000000e+00 : f32
    %190 = vector.broadcast %cst_64 : f32 to vector<2x32xf32>
    %191 = arith.addf %190, %189 : vector<2x32xf32>
    %192 = arith.divf %190, %191 : vector<2x32xf32>
    %193 = vector.extract_strided_slice %172 {offsets = [0, 64], sizes = [2, 32], strides = [1, 1]} : vector<2x96xf32> to vector<2x32xf32>
    %194 = vector.extract_strided_slice %176 {offsets = [0, 64], sizes = [2, 32], strides = [1, 1]} : vector<2x96xf32> to vector<2x32xf32>
    %195 = arith.mulf %184, %194 : vector<2x32xf32>
    %196 = arith.addf %193, %195 : vector<2x32xf32>
    %197 = math.tanh %196 : vector<2x32xf32>
    %cst_65 = arith.constant 1.000000e+00 : f32
    %198 = vector.broadcast %cst_65 : f32 to vector<2x32xf32>
    %199 = arith.subf %198, %192 : vector<2x32xf32>
    %200 = arith.mulf %199, %197 : vector<2x32xf32>
    %201 = arith.mulf %192, %164 : vector<2x32xf32>
    %202 = arith.addf %200, %201 : vector<2x32xf32>
    %c0_66 = arith.constant 0 : index
    %c0_67 = arith.constant 0 : index
    %203 = vector.load %arg14[%c0_66, %c0_67] : memref<2x32xf32, #tpu.memory_space<vmem>>, vector<2x32xf32>
    tpu.vector_store %arg14[%c0_66, %c0_67], %202 {strides = array<i32>} : memref<2x32xf32, #tpu.memory_space<vmem>>, vector<2x32xf32>,
    %204 = arith.index_cast %c3_i32 : i32 to index
    %c0_68 = arith.constant 0 : index
    %c0_69 = arith.constant 0 : index
    %205 = vector.load %arg15[%204, %c0_68, %c0_69] : memref<8x2x32xf32, #tpu.memory_space<vmem>>, vector<1x2x32xf32>
    %206 = vector.shape_cast %205 : vector<1x2x32xf32> to vector<2x32xf32>
    %207 = vector.shape_cast %202 : vector<2x32xf32> to vector<1x2x32xf32>
    tpu.vector_store %arg15[%204, %c0_68, %c0_69], %207 {strides = array<i32>} : memref<8x2x32xf32, #tpu.memory_space<vmem>>, vector<1x2x32xf32>,
    %c4_i32 = arith.constant 4 : i32
    %208 = arith.index_cast %c4_i32 : i32 to index
    %c0_70 = arith.constant 0 : index
    %c0_71 = arith.constant 0 : index
    %209 = vector.load %arg2[%208, %c0_70, %c0_71] : memref<8x2x4xf32, #tpu.memory_space<vmem>>, vector<1x2x4xf32>
    %210 = vector.shape_cast %209 : vector<1x2x4xf32> to vector<2x4xf32>
    %211 = arith.index_cast %c4_i32 : i32 to index
    %c0_72 = arith.constant 0 : index
    %c0_73 = arith.constant 0 : index
    %212 = vector.load %arg3[%211, %c0_72, %c0_73] : memref<8x2x1xf32, #tpu.memory_space<vmem>>, vector<1x2x1xf32>
    %213 = vector.shape_cast %212 : vector<1x2x1xf32> to vector<2x1xf32>
    %c0_74 = arith.constant 0 : index
    %c0_75 = arith.constant 0 : index
    %214 = vector.load %arg14[%c0_74, %c0_75] : memref<2x32xf32, #tpu.memory_space<vmem>>, vector<2x32xf32>
    %215 = arith.truncf %210 : vector<2x4xf32> to vector<2x4xbf16>
    %cst_76 = arith.constant dense<0.000000e+00> : vector<2x96xf32>
    %216 = tpu.matmul %215, %3, %cst_76 {dimension_numbers = #tpu.dot_dimension_numbers<[1], [0], [0], [1], [0, 0, 1, 1], [], []>} : vector<2x4xbf16>, vector<4x96xbf16>, vector<2x96xf32> -> vector<2x96xf32>
    %217 = vector.broadcast %213 : vector<2x1xf32> to vector<2x96xf32>
    %218 = vector.broadcast %4 : vector<1x96xf32> to vector<2x96xf32>
    %219 = arith.mulf %217, %218 : vector<2x96xf32>
    %220 = arith.addf %216, %219 : vector<2x96xf32>
    %221 = vector.broadcast %6 : vector<1x96xf32> to vector<2x96xf32>
    %222 = arith.addf %220, %221 : vector<2x96xf32>
    %223 = arith.truncf %214 : vector<2x32xf32> to vector<2x32xbf16>
    %cst_77 = arith.constant dense<0.000000e+00> : vector<2x96xf32>
    %224 = tpu.matmul %223, %5, %cst_77 {dimension_numbers = #tpu.dot_dimension_numbers<[1], [0], [0], [1], [0, 0, 1, 1], [], []>} : vector<2x32xbf16>, vector<32x96xbf16>, vector<2x96xf32> -> vector<2x96xf32>
    %225 = vector.broadcast %7 : vector<1x96xf32> to vector<2x96xf32>
    %226 = arith.addf %224, %225 : vector<2x96xf32>
    %227 = vector.extract_strided_slice %222 {offsets = [0, 0], sizes = [2, 32], strides = [1, 1]} : vector<2x96xf32> to vector<2x32xf32>
    %228 = vector.extract_strided_slice %226 {offsets = [0, 0], sizes = [2, 32], strides = [1, 1]} : vector<2x96xf32> to vector<2x32xf32>
    %229 = arith.addf %227, %228 : vector<2x32xf32>
    %230 = arith.negf %229 : vector<2x32xf32>
    %231 = math.exp %230 : vector<2x32xf32>
    %cst_78 = arith.constant 1.000000e+00 : f32
    %232 = vector.broadcast %cst_78 : f32 to vector<2x32xf32>
    %233 = arith.addf %232, %231 : vector<2x32xf32>
    %234 = arith.divf %232, %233 : vector<2x32xf32>
    %235 = vector.extract_strided_slice %222 {offsets = [0, 32], sizes = [2, 32], strides = [1, 1]} : vector<2x96xf32> to vector<2x32xf32>
    %236 = vector.extract_strided_slice %226 {offsets = [0, 32], sizes = [2, 32], strides = [1, 1]} : vector<2x96xf32> to vector<2x32xf32>
    %237 = arith.addf %235, %236 : vector<2x32xf32>
    %238 = arith.negf %237 : vector<2x32xf32>
    %239 = math.exp %238 : vector<2x32xf32>
    %cst_79 = arith.constant 1.000000e+00 : f32
    %240 = vector.broadcast %cst_79 : f32 to vector<2x32xf32>
    %241 = arith.addf %240, %239 : vector<2x32xf32>
    %242 = arith.divf %240, %241 : vector<2x32xf32>
    %243 = vector.extract_strided_slice %222 {offsets = [0, 64], sizes = [2, 32], strides = [1, 1]} : vector<2x96xf32> to vector<2x32xf32>
    %244 = vector.extract_strided_slice %226 {offsets = [0, 64], sizes = [2, 32], strides = [1, 1]} : vector<2x96xf32> to vector<2x32xf32>
    %245 = arith.mulf %234, %244 : vector<2x32xf32>
    %246 = arith.addf %243, %245 : vector<2x32xf32>
    %247 = math.tanh %246 : vector<2x32xf32>
    %cst_80 = arith.constant 1.000000e+00 : f32
    %248 = vector.broadcast %cst_80 : f32 to vector<2x32xf32>
    %249 = arith.subf %248, %242 : vector<2x32xf32>
    %250 = arith.mulf %249, %247 : vector<2x32xf32>
    %251 = arith.mulf %242, %214 : vector<2x32xf32>
    %252 = arith.addf %250, %251 : vector<2x32xf32>
    %c0_81 = arith.constant 0 : index
    %c0_82 = arith.constant 0 : index
    %253 = vector.load %arg14[%c0_81, %c0_82] : memref<2x32xf32, #tpu.memory_space<vmem>>, vector<2x32xf32>
    tpu.vector_store %arg14[%c0_81, %c0_82], %252 {strides = array<i32>} : memref<2x32xf32, #tpu.memory_space<vmem>>, vector<2x32xf32>,
    %254 = arith.index_cast %c4_i32 : i32 to index
    %c0_83 = arith.constant 0 : index
    %c0_84 = arith.constant 0 : index
    %255 = vector.load %arg15[%254, %c0_83, %c0_84] : memref<8x2x32xf32, #tpu.memory_space<vmem>>, vector<1x2x32xf32>
    %256 = vector.shape_cast %255 : vector<1x2x32xf32> to vector<2x32xf32>
    %257 = vector.shape_cast %252 : vector<2x32xf32> to vector<1x2x32xf32>
    tpu.vector_store %arg15[%254, %c0_83, %c0_84], %257 {strides = array<i32>} : memref<8x2x32xf32, #tpu.memory_space<vmem>>, vector<1x2x32xf32>,
    %c5_i32 = arith.constant 5 : i32
    %258 = arith.index_cast %c5_i32 : i32 to index
    %c0_85 = arith.constant 0 : index
    %c0_86 = arith.constant 0 : index
    %259 = vector.load %arg2[%258, %c0_85, %c0_86] : memref<8x2x4xf32, #tpu.memory_space<vmem>>, vector<1x2x4xf32>
    %260 = vector.shape_cast %259 : vector<1x2x4xf32> to vector<2x4xf32>
    %261 = arith.index_cast %c5_i32 : i32 to index
    %c0_87 = arith.constant 0 : index
    %c0_88 = arith.constant 0 : index
    %262 = vector.load %arg3[%261, %c0_87, %c0_88] : memref<8x2x1xf32, #tpu.memory_space<vmem>>, vector<1x2x1xf32>
    %263 = vector.shape_cast %262 : vector<1x2x1xf32> to vector<2x1xf32>
    %c0_89 = arith.constant 0 : index
    %c0_90 = arith.constant 0 : index
    %264 = vector.load %arg14[%c0_89, %c0_90] : memref<2x32xf32, #tpu.memory_space<vmem>>, vector<2x32xf32>
    %265 = arith.truncf %260 : vector<2x4xf32> to vector<2x4xbf16>
    %cst_91 = arith.constant dense<0.000000e+00> : vector<2x96xf32>
    %266 = tpu.matmul %265, %3, %cst_91 {dimension_numbers = #tpu.dot_dimension_numbers<[1], [0], [0], [1], [0, 0, 1, 1], [], []>} : vector<2x4xbf16>, vector<4x96xbf16>, vector<2x96xf32> -> vector<2x96xf32>
    %267 = vector.broadcast %263 : vector<2x1xf32> to vector<2x96xf32>
    %268 = vector.broadcast %4 : vector<1x96xf32> to vector<2x96xf32>
    %269 = arith.mulf %267, %268 : vector<2x96xf32>
    %270 = arith.addf %266, %269 : vector<2x96xf32>
    %271 = vector.broadcast %6 : vector<1x96xf32> to vector<2x96xf32>
    %272 = arith.addf %270, %271 : vector<2x96xf32>
    %273 = arith.truncf %264 : vector<2x32xf32> to vector<2x32xbf16>
    %cst_92 = arith.constant dense<0.000000e+00> : vector<2x96xf32>
    %274 = tpu.matmul %273, %5, %cst_92 {dimension_numbers = #tpu.dot_dimension_numbers<[1], [0], [0], [1], [0, 0, 1, 1], [], []>} : vector<2x32xbf16>, vector<32x96xbf16>, vector<2x96xf32> -> vector<2x96xf32>
    %275 = vector.broadcast %7 : vector<1x96xf32> to vector<2x96xf32>
    %276 = arith.addf %274, %275 : vector<2x96xf32>
    %277 = vector.extract_strided_slice %272 {offsets = [0, 0], sizes = [2, 32], strides = [1, 1]} : vector<2x96xf32> to vector<2x32xf32>
    %278 = vector.extract_strided_slice %276 {offsets = [0, 0], sizes = [2, 32], strides = [1, 1]} : vector<2x96xf32> to vector<2x32xf32>
    %279 = arith.addf %277, %278 : vector<2x32xf32>
    %280 = arith.negf %279 : vector<2x32xf32>
    %281 = math.exp %280 : vector<2x32xf32>
    %cst_93 = arith.constant 1.000000e+00 : f32
    %282 = vector.broadcast %cst_93 : f32 to vector<2x32xf32>
    %283 = arith.addf %282, %281 : vector<2x32xf32>
    %284 = arith.divf %282, %283 : vector<2x32xf32>
    %285 = vector.extract_strided_slice %272 {offsets = [0, 32], sizes = [2, 32], strides = [1, 1]} : vector<2x96xf32> to vector<2x32xf32>
    %286 = vector.extract_strided_slice %276 {offsets = [0, 32], sizes = [2, 32], strides = [1, 1]} : vector<2x96xf32> to vector<2x32xf32>
    %287 = arith.addf %285, %286 : vector<2x32xf32>
    %288 = arith.negf %287 : vector<2x32xf32>
    %289 = math.exp %288 : vector<2x32xf32>
    %cst_94 = arith.constant 1.000000e+00 : f32
    %290 = vector.broadcast %cst_94 : f32 to vector<2x32xf32>
    %291 = arith.addf %290, %289 : vector<2x32xf32>
    %292 = arith.divf %290, %291 : vector<2x32xf32>
    %293 = vector.extract_strided_slice %272 {offsets = [0, 64], sizes = [2, 32], strides = [1, 1]} : vector<2x96xf32> to vector<2x32xf32>
    %294 = vector.extract_strided_slice %276 {offsets = [0, 64], sizes = [2, 32], strides = [1, 1]} : vector<2x96xf32> to vector<2x32xf32>
    %295 = arith.mulf %284, %294 : vector<2x32xf32>
    %296 = arith.addf %293, %295 : vector<2x32xf32>
    %297 = math.tanh %296 : vector<2x32xf32>
    %cst_95 = arith.constant 1.000000e+00 : f32
    %298 = vector.broadcast %cst_95 : f32 to vector<2x32xf32>
    %299 = arith.subf %298, %292 : vector<2x32xf32>
    %300 = arith.mulf %299, %297 : vector<2x32xf32>
    %301 = arith.mulf %292, %264 : vector<2x32xf32>
    %302 = arith.addf %300, %301 : vector<2x32xf32>
    %c0_96 = arith.constant 0 : index
    %c0_97 = arith.constant 0 : index
    %303 = vector.load %arg14[%c0_96, %c0_97] : memref<2x32xf32, #tpu.memory_space<vmem>>, vector<2x32xf32>
    tpu.vector_store %arg14[%c0_96, %c0_97], %302 {strides = array<i32>} : memref<2x32xf32, #tpu.memory_space<vmem>>, vector<2x32xf32>,
    %304 = arith.index_cast %c5_i32 : i32 to index
    %c0_98 = arith.constant 0 : index
    %c0_99 = arith.constant 0 : index
    %305 = vector.load %arg15[%304, %c0_98, %c0_99] : memref<8x2x32xf32, #tpu.memory_space<vmem>>, vector<1x2x32xf32>
    %306 = vector.shape_cast %305 : vector<1x2x32xf32> to vector<2x32xf32>
    %307 = vector.shape_cast %302 : vector<2x32xf32> to vector<1x2x32xf32>
    tpu.vector_store %arg15[%304, %c0_98, %c0_99], %307 {strides = array<i32>} : memref<8x2x32xf32, #tpu.memory_space<vmem>>, vector<1x2x32xf32>,
    %c6_i32 = arith.constant 6 : i32
    %308 = arith.index_cast %c6_i32 : i32 to index
    %c0_100 = arith.constant 0 : index
    %c0_101 = arith.constant 0 : index
    %309 = vector.load %arg2[%308, %c0_100, %c0_101] : memref<8x2x4xf32, #tpu.memory_space<vmem>>, vector<1x2x4xf32>
    %310 = vector.shape_cast %309 : vector<1x2x4xf32> to vector<2x4xf32>
    %311 = arith.index_cast %c6_i32 : i32 to index
    %c0_102 = arith.constant 0 : index
    %c0_103 = arith.constant 0 : index
    %312 = vector.load %arg3[%311, %c0_102, %c0_103] : memref<8x2x1xf32, #tpu.memory_space<vmem>>, vector<1x2x1xf32>
    %313 = vector.shape_cast %312 : vector<1x2x1xf32> to vector<2x1xf32>
    %c0_104 = arith.constant 0 : index
    %c0_105 = arith.constant 0 : index
    %314 = vector.load %arg14[%c0_104, %c0_105] : memref<2x32xf32, #tpu.memory_space<vmem>>, vector<2x32xf32>
    %315 = arith.truncf %310 : vector<2x4xf32> to vector<2x4xbf16>
    %cst_106 = arith.constant dense<0.000000e+00> : vector<2x96xf32>
    %316 = tpu.matmul %315, %3, %cst_106 {dimension_numbers = #tpu.dot_dimension_numbers<[1], [0], [0], [1], [0, 0, 1, 1], [], []>} : vector<2x4xbf16>, vector<4x96xbf16>, vector<2x96xf32> -> vector<2x96xf32>
    %317 = vector.broadcast %313 : vector<2x1xf32> to vector<2x96xf32>
    %318 = vector.broadcast %4 : vector<1x96xf32> to vector<2x96xf32>
    %319 = arith.mulf %317, %318 : vector<2x96xf32>
    %320 = arith.addf %316, %319 : vector<2x96xf32>
    %321 = vector.broadcast %6 : vector<1x96xf32> to vector<2x96xf32>
    %322 = arith.addf %320, %321 : vector<2x96xf32>
    %323 = arith.truncf %314 : vector<2x32xf32> to vector<2x32xbf16>
    %cst_107 = arith.constant dense<0.000000e+00> : vector<2x96xf32>
    %324 = tpu.matmul %323, %5, %cst_107 {dimension_numbers = #tpu.dot_dimension_numbers<[1], [0], [0], [1], [0, 0, 1, 1], [], []>} : vector<2x32xbf16>, vector<32x96xbf16>, vector<2x96xf32> -> vector<2x96xf32>
    %325 = vector.broadcast %7 : vector<1x96xf32> to vector<2x96xf32>
    %326 = arith.addf %324, %325 : vector<2x96xf32>
    %327 = vector.extract_strided_slice %322 {offsets = [0, 0], sizes = [2, 32], strides = [1, 1]} : vector<2x96xf32> to vector<2x32xf32>
    %328 = vector.extract_strided_slice %326 {offsets = [0, 0], sizes = [2, 32], strides = [1, 1]} : vector<2x96xf32> to vector<2x32xf32>
    %329 = arith.addf %327, %328 : vector<2x32xf32>
    %330 = arith.negf %329 : vector<2x32xf32>
    %331 = math.exp %330 : vector<2x32xf32>
    %cst_108 = arith.constant 1.000000e+00 : f32
    %332 = vector.broadcast %cst_108 : f32 to vector<2x32xf32>
    %333 = arith.addf %332, %331 : vector<2x32xf32>
    %334 = arith.divf %332, %333 : vector<2x32xf32>
    %335 = vector.extract_strided_slice %322 {offsets = [0, 32], sizes = [2, 32], strides = [1, 1]} : vector<2x96xf32> to vector<2x32xf32>
    %336 = vector.extract_strided_slice %326 {offsets = [0, 32], sizes = [2, 32], strides = [1, 1]} : vector<2x96xf32> to vector<2x32xf32>
    %337 = arith.addf %335, %336 : vector<2x32xf32>
    %338 = arith.negf %337 : vector<2x32xf32>
    %339 = math.exp %338 : vector<2x32xf32>
    %cst_109 = arith.constant 1.000000e+00 : f32
    %340 = vector.broadcast %cst_109 : f32 to vector<2x32xf32>
    %341 = arith.addf %340, %339 : vector<2x32xf32>
    %342 = arith.divf %340, %341 : vector<2x32xf32>
    %343 = vector.extract_strided_slice %322 {offsets = [0, 64], sizes = [2, 32], strides = [1, 1]} : vector<2x96xf32> to vector<2x32xf32>
    %344 = vector.extract_strided_slice %326 {offsets = [0, 64], sizes = [2, 32], strides = [1, 1]} : vector<2x96xf32> to vector<2x32xf32>
    %345 = arith.mulf %334, %344 : vector<2x32xf32>
    %346 = arith.addf %343, %345 : vector<2x32xf32>
    %347 = math.tanh %346 : vector<2x32xf32>
    %cst_110 = arith.constant 1.000000e+00 : f32
    %348 = vector.broadcast %cst_110 : f32 to vector<2x32xf32>
    %349 = arith.subf %348, %342 : vector<2x32xf32>
    %350 = arith.mulf %349, %347 : vector<2x32xf32>
    %351 = arith.mulf %342, %314 : vector<2x32xf32>
    %352 = arith.addf %350, %351 : vector<2x32xf32>
    %c0_111 = arith.constant 0 : index
    %c0_112 = arith.constant 0 : index
    %353 = vector.load %arg14[%c0_111, %c0_112] : memref<2x32xf32, #tpu.memory_space<vmem>>, vector<2x32xf32>
    tpu.vector_store %arg14[%c0_111, %c0_112], %352 {strides = array<i32>} : memref<2x32xf32, #tpu.memory_space<vmem>>, vector<2x32xf32>,
    %354 = arith.index_cast %c6_i32 : i32 to index
    %c0_113 = arith.constant 0 : index
    %c0_114 = arith.constant 0 : index
    %355 = vector.load %arg15[%354, %c0_113, %c0_114] : memref<8x2x32xf32, #tpu.memory_space<vmem>>, vector<1x2x32xf32>
    %356 = vector.shape_cast %355 : vector<1x2x32xf32> to vector<2x32xf32>
    %357 = vector.shape_cast %352 : vector<2x32xf32> to vector<1x2x32xf32>
    tpu.vector_store %arg15[%354, %c0_113, %c0_114], %357 {strides = array<i32>} : memref<8x2x32xf32, #tpu.memory_space<vmem>>, vector<1x2x32xf32>,
    %c7_i32 = arith.constant 7 : i32
    %358 = arith.index_cast %c7_i32 : i32 to index
    %c0_115 = arith.constant 0 : index
    %c0_116 = arith.constant 0 : index
    %359 = vector.load %arg2[%358, %c0_115, %c0_116] : memref<8x2x4xf32, #tpu.memory_space<vmem>>, vector<1x2x4xf32>
    %360 = vector.shape_cast %359 : vector<1x2x4xf32> to vector<2x4xf32>
    %361 = arith.index_cast %c7_i32 : i32 to index
    %c0_117 = arith.constant 0 : index
    %c0_118 = arith.constant 0 : index
    %362 = vector.load %arg3[%361, %c0_117, %c0_118] : memref<8x2x1xf32, #tpu.memory_space<vmem>>, vector<1x2x1xf32>
    %363 = vector.shape_cast %362 : vector<1x2x1xf32> to vector<2x1xf32>
    %c0_119 = arith.constant 0 : index
    %c0_120 = arith.constant 0 : index
    %364 = vector.load %arg14[%c0_119, %c0_120] : memref<2x32xf32, #tpu.memory_space<vmem>>, vector<2x32xf32>
    %365 = arith.truncf %360 : vector<2x4xf32> to vector<2x4xbf16>
    %cst_121 = arith.constant dense<0.000000e+00> : vector<2x96xf32>
    %366 = tpu.matmul %365, %3, %cst_121 {dimension_numbers = #tpu.dot_dimension_numbers<[1], [0], [0], [1], [0, 0, 1, 1], [], []>} : vector<2x4xbf16>, vector<4x96xbf16>, vector<2x96xf32> -> vector<2x96xf32>
    %367 = vector.broadcast %363 : vector<2x1xf32> to vector<2x96xf32>
    %368 = vector.broadcast %4 : vector<1x96xf32> to vector<2x96xf32>
    %369 = arith.mulf %367, %368 : vector<2x96xf32>
    %370 = arith.addf %366, %369 : vector<2x96xf32>
    %371 = vector.broadcast %6 : vector<1x96xf32> to vector<2x96xf32>
    %372 = arith.addf %370, %371 : vector<2x96xf32>
    %373 = arith.truncf %364 : vector<2x32xf32> to vector<2x32xbf16>
    %cst_122 = arith.constant dense<0.000000e+00> : vector<2x96xf32>
    %374 = tpu.matmul %373, %5, %cst_122 {dimension_numbers = #tpu.dot_dimension_numbers<[1], [0], [0], [1], [0, 0, 1, 1], [], []>} : vector<2x32xbf16>, vector<32x96xbf16>, vector<2x96xf32> -> vector<2x96xf32>
    %375 = vector.broadcast %7 : vector<1x96xf32> to vector<2x96xf32>
    %376 = arith.addf %374, %375 : vector<2x96xf32>
    %377 = vector.extract_strided_slice %372 {offsets = [0, 0], sizes = [2, 32], strides = [1, 1]} : vector<2x96xf32> to vector<2x32xf32>
    %378 = vector.extract_strided_slice %376 {offsets = [0, 0], sizes = [2, 32], strides = [1, 1]} : vector<2x96xf32> to vector<2x32xf32>
    %379 = arith.addf %377, %378 : vector<2x32xf32>
    %380 = arith.negf %379 : vector<2x32xf32>
    %381 = math.exp %380 : vector<2x32xf32>
    %cst_123 = arith.constant 1.000000e+00 : f32
    %382 = vector.broadcast %cst_123 : f32 to vector<2x32xf32>
    %383 = arith.addf %382, %381 : vector<2x32xf32>
    %384 = arith.divf %382, %383 : vector<2x32xf32>
    %385 = vector.extract_strided_slice %372 {offsets = [0, 32], sizes = [2, 32], strides = [1, 1]} : vector<2x96xf32> to vector<2x32xf32>
    %386 = vector.extract_strided_slice %376 {offsets = [0, 32], sizes = [2, 32], strides = [1, 1]} : vector<2x96xf32> to vector<2x32xf32>
    %387 = arith.addf %385, %386 : vector<2x32xf32>
    %388 = arith.negf %387 : vector<2x32xf32>
    %389 = math.exp %388 : vector<2x32xf32>
    %cst_124 = arith.constant 1.000000e+00 : f32
    %390 = vector.broadcast %cst_124 : f32 to vector<2x32xf32>
    %391 = arith.addf %390, %389 : vector<2x32xf32>
    %392 = arith.divf %390, %391 : vector<2x32xf32>
    %393 = vector.extract_strided_slice %372 {offsets = [0, 64], sizes = [2, 32], strides = [1, 1]} : vector<2x96xf32> to vector<2x32xf32>
    %394 = vector.extract_strided_slice %376 {offsets = [0, 64], sizes = [2, 32], strides = [1, 1]} : vector<2x96xf32> to vector<2x32xf32>
    %395 = arith.mulf %384, %394 : vector<2x32xf32>
    %396 = arith.addf %393, %395 : vector<2x32xf32>
    %397 = math.tanh %396 : vector<2x32xf32>
    %cst_125 = arith.constant 1.000000e+00 : f32
    %398 = vector.broadcast %cst_125 : f32 to vector<2x32xf32>
    %399 = arith.subf %398, %392 : vector<2x32xf32>
    %400 = arith.mulf %399, %397 : vector<2x32xf32>
    %401 = arith.mulf %392, %364 : vector<2x32xf32>
    %402 = arith.addf %400, %401 : vector<2x32xf32>
    %c0_126 = arith.constant 0 : index
    %c0_127 = arith.constant 0 : index
    %403 = vector.load %arg14[%c0_126, %c0_127] : memref<2x32xf32, #tpu.memory_space<vmem>>, vector<2x32xf32>
    tpu.vector_store %arg14[%c0_126, %c0_127], %402 {strides = array<i32>} : memref<2x32xf32, #tpu.memory_space<vmem>>, vector<2x32xf32>,
    %404 = arith.index_cast %c7_i32 : i32 to index
    %c0_128 = arith.constant 0 : index
    %c0_129 = arith.constant 0 : index
    %405 = vector.load %arg15[%404, %c0_128, %c0_129] : memref<8x2x32xf32, #tpu.memory_space<vmem>>, vector<1x2x32xf32>
    %406 = vector.shape_cast %405 : vector<1x2x32xf32> to vector<2x32xf32>
    %407 = vector.shape_cast %402 : vector<2x32xf32> to vector<1x2x32xf32>
    tpu.vector_store %arg15[%404, %c0_128, %c0_129], %407 {strides = array<i32>} : memref<8x2x32xf32, #tpu.memory_space<vmem>>, vector<1x2x32xf32>,
    %c8_i32 = arith.constant 8 : i32
    %c0_130 = arith.constant 0 : index
    %c0_131 = arith.constant 0 : index
    %c0_132 = arith.constant 0 : index
    %408 = vector.load %arg15[%c0_130, %c0_131, %c0_132] : memref<8x2x32xf32, #tpu.memory_space<vmem>>, vector<8x2x32xf32>
    %409 = vector.shape_cast %408 : vector<8x2x32xf32> to vector<16x32xf32>
    %410 = arith.truncf %409 : vector<16x32xf32> to vector<16x32xbf16>
    %c0_133 = arith.constant 0 : index
    %c0_134 = arith.constant 0 : index
    %411 = vector.load %arg9[%c0_133, %c0_134] : memref<32x32xbf16, #tpu.memory_space<vmem>>, vector<32x32xbf16>
    %cst_135 = arith.constant dense<0.000000e+00> : vector<16x32xf32>
    %412 = tpu.matmul %410, %411, %cst_135 {dimension_numbers = #tpu.dot_dimension_numbers<[1], [0], [0], [1], [0, 0, 1, 1], [], []>} : vector<16x32xbf16>, vector<32x32xbf16>, vector<16x32xf32> -> vector<16x32xf32>
    %c0_136 = arith.constant 0 : index
    %c0_137 = arith.constant 0 : index
    %413 = vector.load %arg10[%c0_136, %c0_137] : memref<1x32xf32, #tpu.memory_space<vmem>>, vector<1x32xf32>
    %414 = vector.broadcast %413 : vector<1x32xf32> to vector<16x32xf32>
    %415 = arith.addf %412, %414 : vector<16x32xf32>
    %cst_138 = arith.constant 0.000000e+00 : f32
    %416 = vector.broadcast %cst_138 : f32 to vector<16x32xf32>
    %417 = arith.maximumf %415, %416 : vector<16x32xf32>
    %418 = arith.truncf %417 : vector<16x32xf32> to vector<16x32xbf16>
    %c0_139 = arith.constant 0 : index
    %c0_140 = arith.constant 0 : index
    %419 = vector.load %arg11[%c0_139, %c0_140] : memref<32x4xbf16, #tpu.memory_space<vmem>>, vector<32x4xbf16>
    %cst_141 = arith.constant dense<0.000000e+00> : vector<16x4xf32>
    %420 = tpu.matmul %418, %419, %cst_141 {dimension_numbers = #tpu.dot_dimension_numbers<[1], [0], [0], [1], [0, 0, 1, 1], [], []>} : vector<16x32xbf16>, vector<32x4xbf16>, vector<16x4xf32> -> vector<16x4xf32>
    %c0_142 = arith.constant 0 : index
    %c0_143 = arith.constant 0 : index
    %421 = vector.load %arg12[%c0_142, %c0_143] : memref<1x4xf32, #tpu.memory_space<vmem>>, vector<1x4xf32>
    %422 = vector.broadcast %421 : vector<1x4xf32> to vector<16x4xf32>
    %423 = arith.addf %420, %422 : vector<16x4xf32>
    %424 = vector.shape_cast %423 : vector<16x4xf32> to vector<8x2x4xf32>
    %cst_144 = arith.constant 5.000000e-01 : f32
    %425 = vector.broadcast %cst_144 : f32 to vector<8x2x4xf32>
    %426 = arith.mulf %424, %425 : vector<8x2x4xf32>
    %c0_145 = arith.constant 0 : index
    %c0_146 = arith.constant 0 : index
    %c0_147 = arith.constant 0 : index
    %427 = vector.load %arg3[%c0_145, %c0_146, %c0_147] : memref<8x2x1xf32, #tpu.memory_space<vmem>>, vector<8x2x1xf32>
    %428 = vector.broadcast %427 : vector<8x2x1xf32> to vector<8x2x4xf32>
    %429 = arith.addf %426, %428 : vector<8x2x4xf32>
    %c0_148 = arith.constant 0 : index
    %c0_149 = arith.constant 0 : index
    %c0_150 = arith.constant 0 : index
    %430 = vector.load %arg13[%c0_148, %c0_149, %c0_150] : memref<8x2x4xf32, #tpu.memory_space<vmem>>, vector<8x2x4xf32>
    tpu.vector_store %arg13[%c0_148, %c0_149, %c0_150], %429 {strides = array<i32>} : memref<8x2x4xf32, #tpu.memory_space<vmem>>, vector<8x2x4xf32>,
    return
  }
  func.func @transform_0(%arg0: i32, %arg1: i32) -> (i32, i32, i32) {
    %c0_i32 = arith.constant 0 : i32
    %c0_i32_0 = arith.constant 0 : i32
    return %arg1, %arg0, %c0_i32 : i32, i32, i32
  }
  func.func @transform_1(%arg0: i32, %arg1: i32) -> (i32, i32, i32) {
    %c0_i32 = arith.constant 0 : i32
    %c0_i32_0 = arith.constant 0 : i32
    return %arg1, %arg0, %c0_i32 : i32, i32, i32
  }
  func.func @transform_2(%arg0: i32, %arg1: i32) -> (i32, i32) {
    %c0_i32 = arith.constant 0 : i32
    %c0_i32_0 = arith.constant 0 : i32
    %c0_i32_1 = arith.constant 0 : i32
    return %c0_i32, %c0_i32_0 : i32, i32
  }
  func.func @transform_3(%arg0: i32, %arg1: i32) -> (i32, i32) {
    %c0_i32 = arith.constant 0 : i32
    %c0_i32_0 = arith.constant 0 : i32
    %c0_i32_1 = arith.constant 0 : i32
    return %c0_i32, %c0_i32_0 : i32, i32
  }
  func.func @transform_4(%arg0: i32, %arg1: i32) -> (i32, i32) {
    %c0_i32 = arith.constant 0 : i32
    %c0_i32_0 = arith.constant 0 : i32
    %c0_i32_1 = arith.constant 0 : i32
    return %c0_i32, %c0_i32_0 : i32, i32
  }
  func.func @transform_5(%arg0: i32, %arg1: i32) -> (i32, i32) {
    %c0_i32 = arith.constant 0 : i32
    %c0_i32_0 = arith.constant 0 : i32
    %c0_i32_1 = arith.constant 0 : i32
    return %c0_i32, %c0_i32_0 : i32, i32
  }
  func.func @transform_6(%arg0: i32, %arg1: i32) -> (i32, i32) {
    %c0_i32 = arith.constant 0 : i32
    %c0_i32_0 = arith.constant 0 : i32
    %c0_i32_1 = arith.constant 0 : i32
    return %c0_i32, %c0_i32_0 : i32, i32
  }
  func.func @transform_7(%arg0: i32, %arg1: i32) -> (i32, i32) {
    %c0_i32 = arith.constant 0 : i32
    %c0_i32_0 = arith.constant 0 : i32
    %c0_i32_1 = arith.constant 0 : i32
    return %c0_i32, %c0_i32_0 : i32, i32
  }
  func.func @transform_8(%arg0: i32, %arg1: i32) -> (i32, i32) {
    %c0_i32 = arith.constant 0 : i32
    %c0_i32_0 = arith.constant 0 : i32
    %c0_i32_1 = arith.constant 0 : i32
    return %c0_i32, %c0_i32_0 : i32, i32
  }
  func.func @transform_9(%arg0: i32, %arg1: i32) -> (i32, i32) {
    %c0_i32 = arith.constant 0 : i32
    %c0_i32_0 = arith.constant 0 : i32
    %c0_i32_1 = arith.constant 0 : i32
    return %c0_i32, %c0_i32_0 : i32, i32
  }
  func.func @transform_10(%arg0: i32, %arg1: i32) -> (i32, i32) {
    %c0_i32 = arith.constant 0 : i32
    %c0_i32_0 = arith.constant 0 : i32
    %c0_i32_1 = arith.constant 0 : i32
    return %c0_i32, %c0_i32_0 : i32, i32
  }
  func.func @transform_11(%arg0: i32, %arg1: i32) -> (i32, i32, i32) {
    %c0_i32 = arith.constant 0 : i32
    %c0_i32_0 = arith.constant 0 : i32
    return %arg1, %arg0, %c0_i32 : i32, i32, i32
  }
}

</mosaic_0001>

<llo_original>
// kernel: tpu_custom_call.1
$region0: #{tpu_custom_call.1}
  #allocation0 [shape = 'u32[]', space=smem, size = 0x4, offset = 0x4, fixed_abs, tag = 'smem constant byte address 0x4 - core index']
  #allocation1 [shape = 'u32[144,128]{1,0:T(1,128)}', space=vmem, size = 0x12000, scoped, tag = 'internal scratch']
  #allocation2 [shape = 'f32[2,32]{1,0:T(2,128)}', space=vmem, size = 0x400, scoped, tag = 'scratch operand']
  #allocation3 [shape = 'f32[8,2,32]{2,1,0:T(2,128)}', space=vmem, size = 0x2000, scoped, tag = 'scratch operand']
  %s0 = inlined_call_operand.vmem [shape: f32[8,2,4], index: 0, kind: input, shape index: {}]
  %s1 = inlined_call_operand.vmem [shape: f32[8,2,1], index: 1, kind: input, shape index: {}]
  %s2 = inlined_call_operand.vmem [shape: bf16[4,96], index: 2, kind: input, shape index: {}]
  %s3 = inlined_call_operand.vmem [shape: f32[1,96], index: 3, kind: input, shape index: {}]
  %s4 = inlined_call_operand.vmem [shape: bf16[32,96], index: 4, kind: input, shape index: {}]
  %s5 = inlined_call_operand.vmem [shape: f32[1,96], index: 5, kind: input, shape index: {}]
  %s6 = inlined_call_operand.vmem [shape: f32[1,96], index: 6, kind: input, shape index: {}]
  %s7 = inlined_call_operand.vmem [shape: bf16[32,32], index: 7, kind: input, shape index: {}]
  %s8 = inlined_call_operand.vmem [shape: f32[1,32], index: 8, kind: input, shape index: {}]
  %s9 = inlined_call_operand.vmem [shape: bf16[32,4], index: 9, kind: input, shape index: {}]
  %s10 = inlined_call_operand.vmem [shape: f32[1,4], index: 10, kind: input, shape index: {}]
  %s11 = inlined_call_operand.vmem [shape: f32[8,2,4], index: 11, kind: output, shape index: {}]
  %s12 = sld [smem:[#allocation0]]
  $region58: #{tpu_custom_call.1} parent=0
    _
  %s14 = ssub.s32 1, %s12
  %s15 = scalar_select 0, %s14, %s12
  // Predicated region
  $region2: #{tpu_custom_call.1} parent=0 // pred_check
    _
  $region3: #{tpu_custom_call.1} parent=0 // pred_check_branch
    %17 = sbr.rel (0) target = $region5
  $region4: #{tpu_custom_call.1} parent=0 // pred_region
    _
  $region5: #{tpu_custom_call.1} parent=0 // pred_fallthru
    _
  // Predicated region
  $region6: #{tpu_custom_call.1} parent=0 // pred_check
    _
  $region7: #{tpu_custom_call.1} parent=0 // pred_check_branch
    %19 = sbr.rel (0) target = $region9
  $region8: #{tpu_custom_call.1} parent=0 // pred_region
    _
  $region9: #{tpu_custom_call.1} parent=0 // pred_fallthru
    _
  // Predicated region
  $region10: #{tpu_custom_call.1} parent=0 // pred_check
    _
  $region11: #{tpu_custom_call.1} parent=0 // pred_check_branch
    %21 = sbr.rel (0) target = $region13
  $region12: #{tpu_custom_call.1} parent=0 // pred_region
    _
  $region13: #{tpu_custom_call.1} parent=0 // pred_fallthru
    _
  // Predicated region
  $region14: #{tpu_custom_call.1} parent=0 // pred_check
    _
  $region15: #{tpu_custom_call.1} parent=0 // pred_check_branch
    %23 = sbr.rel (0) target = $region17
  $region16: #{tpu_custom_call.1} parent=0 // pred_region
    _
  $region17: #{tpu_custom_call.1} parent=0 // pred_fallthru
    _
  // Predicated region
  $region18: #{tpu_custom_call.1} parent=0 // pred_check
    _
  $region19: #{tpu_custom_call.1} parent=0 // pred_check_branch
    %25 = sbr.rel (0) target = $region21
  $region20: #{tpu_custom_call.1} parent=0 // pred_region
    _
  $region21: #{tpu_custom_call.1} parent=0 // pred_fallthru
    _
  // Predicated region
  $region22: #{tpu_custom_call.1} parent=0 // pred_check
    _
  $region23: #{tpu_custom_call.1} parent=0 // pred_check_branch
    %27 = sbr.rel (0) target = $region25
  $region24: #{tpu_custom_call.1} parent=0 // pred_region
    _
  $region25: #{tpu_custom_call.1} parent=0 // pred_fallthru
    _
  // Predicated region
  $region26: #{tpu_custom_call.1} parent=0 // pred_check
    _
  $region27: #{tpu_custom_call.1} parent=0 // pred_check_branch
    %29 = sbr.rel (0) target = $region29
  $region28: #{tpu_custom_call.1} parent=0 // pred_region
    _
  $region29: #{tpu_custom_call.1} parent=0 // pred_fallthru
    _
  // Predicated region
  $region30: #{tpu_custom_call.1} parent=0 // pred_check
    _
  $region31: #{tpu_custom_call.1} parent=0 // pred_check_branch
    %31 = sbr.rel (0) target = $region33
  $region32: #{tpu_custom_call.1} parent=0 // pred_region
    _
  $region33: #{tpu_custom_call.1} parent=0 // pred_fallthru
    _
  // Predicated region
  $region34: #{tpu_custom_call.1} parent=0 // pred_check
    _
  $region35: #{tpu_custom_call.1} parent=0 // pred_check_branch
    %33 = sbr.rel (0) target = $region37
  $region36: #{tpu_custom_call.1} parent=0 // pred_region
    _
  $region37: #{tpu_custom_call.1} parent=0 // pred_fallthru
    _
  // Predicated region
  $region38: #{tpu_custom_call.1} parent=0 // pred_check
    _
  $region39: #{tpu_custom_call.1} parent=0 // pred_check_branch
    %35 = sbr.rel (0) target = $region41
  $region40: #{tpu_custom_call.1} parent=0 // pred_region
    _
  $region41: #{tpu_custom_call.1} parent=0 // pred_fallthru
    _
  // Predicated region
  $region42: #{tpu_custom_call.1} parent=0 // pred_check
    _
  $region43: #{tpu_custom_call.1} parent=0 // pred_check_branch
    %37 = sbr.rel (0) target = $region45
  $region44: #{tpu_custom_call.1} parent=0 // pred_region
    _
  $region45: #{tpu_custom_call.1} parent=0 // pred_fallthru
    _
  %p39 = scmp.eq.s32.totalorder 0, 0
  // Predicated region
  $region46: #{tpu_custom_call.1} parent=0 // pred_check
    %p40 = pneg %p39
  $region47: #{tpu_custom_call.1} parent=0 // pred_check_branch
    %42 = sbr.rel (%p40) target = $region49
  $region48: #{tpu_custom_call.1} parent=0 // pred_region
    %vm43 = vcmask 254976
    %44 = vst.msk [vmem:[#allocation2] sm:$0x3] %vm43, 0.0
  $region49: #{tpu_custom_call.1} parent=0 // pred_fallthru
    _
  %v45 = vld [vmem:[%s2] sm:$0x3]
  %v46 = vld [vmem:[%s3] sm:$0x1]
  %v47 = vld [vmem:[%s4] sm:$0xf]
  %v48 = vld [vmem:[%s4 + $0x4] sm:$0xf]
  %v49 = vld [vmem:[%s4 + $0x8] sm:$0xf]
  %v50 = vld [vmem:[%s4 + $0xc] sm:$0xf]
  %v51 = vld [vmem:[%s5] sm:$0x1]
  %v52 = vld [vmem:[%s6] sm:$0x1]
  %v53 = vld [vmem:[%s0] sm:$0x3]
  %v54 = vld [vmem:[%s1] sm:$0x3]
  %v55 = vld [vmem:[#allocation2] sm:$0x3]
  %v56 = vpack.c.bf16 %v53, %v53
  %58 = vset.pattern.permute.xlu0 0
  %59 = vperm.xlu0 %58, %v54
  %v60 = vpop.permute.xlu0 %59
  %v63 = vlaneseq
  %v64 = vshrl.u32 %v63, 7
  %v65 = vsub.s32 0, %v64
  %v66 = vrot.slane %v46, %v65
  %v68 = vmul.f32 %v60, %v66
  %vm69 = vcmask 31744
  %v71 = vsel %vm69, %v56, 0
  %vm73 = vcmask 1041408
  %v75 = vsel %vm73, %v45, 0
  %77 = vmatprep.subr.bf16.mxu0 0
  %78 = vmatpush1.bf16.msra.mxu0 %v75
  %79 = vmatprep.subr.bf16.mxu0 0
  %80 = vmatpush1.bf16.msra.mxu0 0
  %81 = vmatprep.subr.bf16.mxu0 0
  %82 = vmatpush1.bf16.msra.mxu0 0
  %83 = vmatprep.subr.bf16.mxu0 0
  %84 = vmatpush1.bf16.msra.mxu0 0
  %85 = vmatprep.subr.bf16.mxu0 0
  %86 = vmatpush1.bf16.msra.mxu0 0
  %87 = vmatprep.subr.bf16.mxu0 0
  %88 = vmatpush1.bf16.msra.mxu0 0
  %89 = vmatprep.subr.bf16.mxu0 0
  %90 = vmatpush1.bf16.msra.mxu0 0
  %91 = vmatprep.subr.bf16.mxu0 0
  %92 = vmatpush1.bf16.msra.mxu0 0
  %93 = vmatprep.subr.bf16.mxu0 0
  %94 = vmatpush1.bf16.msra.mxu0 0
  %95 = vmatprep.subr.bf16.mxu0 0
  %96 = vmatpush1.bf16.msra.mxu0 0
  %97 = vmatprep.subr.bf16.mxu0 0
  %98 = vmatpush1.bf16.msra.mxu0 0
  %99 = vmatprep.subr.bf16.mxu0 0
  %100 = vmatpush1.bf16.msra.mxu0 0
  %101 = vmatprep.subr.bf16.mxu0 0
  %102 = vmatpush1.bf16.msra.mxu0 0
  %103 = vmatprep.subr.bf16.mxu0 0
  %104 = vmatpush1.bf16.msra.mxu0 0
  %105 = vmatprep.subr.bf16.mxu0 0
  %106 = vmatpush1.bf16.msra.mxu0 0
  %107 = vmatprep.subr.bf16.mxu0 0
  %108 = vmatpush1.bf16.msra.mxu0 0
  %109 = vmatprep.mubr.bf16.mxu0 0
  %110 = vmatmul.mubr.bf16.gmra.mrb[0].mxu0 %v71
  %v111 = vpop.f32.mrb[0].mxu0
  %v112 = vadd.f32 %v68, %v111
  %v113 = vpop.f32.mrb[0].mxu0
  %v114 = vpop.f32.mrb[0].mxu0
  %v115 = vpop.f32.mrb[0].mxu0
  %116 = vdwg.mxu0
  %v118 = vlaneseq
  %v119 = vshrl.u32 %v118, 7
  %v120 = vsub.s32 0, %v119
  %v121 = vrot.slane %v51, %v120
  %v123 = vadd.f32 %v112, %v121
  %v124 = vpack.c.bf16 %v55, %v55
  %v126 = vlaneseq
  %v127 = vshrl.u32 %v126, 7
  %v128 = vsub.s32 0, %v127
  %v129 = vrot.slane %v52, %v128
  %v135 = vunpack.c.l.b16 %v47
  %v136 = vunpack.c.l.b16 %v48
  %v137 = vunpack.c.l.b16 %v49
  %v138 = vunpack.c.l.b16 %v50
  %v139 = vpack.c.b16 %v136, %v135
  %v140 = vpack.c.b16 %v138, %v137
  %vm143 = vcmask 261120
  %v145 = vsel %vm143, %v124, 0
  %147 = vmatprep.subr.bf16.mxu0 0
  %148 = vmatpush1.bf16.msra.mxu0 %v139
  %149 = vmatprep.subr.bf16.mxu0 0
  %150 = vmatpush1.bf16.msra.mxu0 %v140
  %151 = vmatprep.subr.bf16.mxu0 0
  %152 = vmatpush1.bf16.msra.mxu0 0
  %153 = vmatprep.subr.bf16.mxu0 0
  %154 = vmatpush1.bf16.msra.mxu0 0
  %155 = vmatprep.subr.bf16.mxu0 0
  %156 = vmatpush1.bf16.msra.mxu0 0
  %157 = vmatprep.subr.bf16.mxu0 0
  %158 = vmatpush1.bf16.msra.mxu0 0
  %159 = vmatprep.subr.bf16.mxu0 0
  %160 = vmatpush1.bf16.msra.mxu0 0
  %161 = vmatprep.subr.bf16.mxu0 0
  %162 = vmatpush1.bf16.msra.mxu0 0
  %163 = vmatprep.subr.bf16.mxu0 0
  %164 = vmatpush1.bf16.msra.mxu0 0
  %165 = vmatprep.subr.bf16.mxu0 0
  %166 = vmatpush1.bf16.msra.mxu0 0
  %167 = vmatprep.subr.bf16.mxu0 0
  %168 = vmatpush1.bf16.msra.mxu0 0
  %169 = vmatprep.subr.bf16.mxu0 0
  %170 = vmatpush1.bf16.msra.mxu0 0
  %171 = vmatprep.subr.bf16.mxu0 0
  %172 = vmatpush1.bf16.msra.mxu0 0
  %173 = vmatprep.subr.bf16.mxu0 0
  %174 = vmatpush1.bf16.msra.mxu0 0
  %175 = vmatprep.subr.bf16.mxu0 0
  %176 = vmatpush1.bf16.msra.mxu0 0
  %177 = vmatprep.subr.bf16.mxu0 0
  %178 = vmatpush1.bf16.msra.mxu0 0
  %179 = vmatprep.mubr.bf16.mxu0 0
  %180 = vmatmul.mubr.bf16.gmra.mrb[0].mxu0 %v145
  %v181 = vpop.f32.mrb[0].mxu0
  %v182 = vadd.f32 %v129, %v181
  %v183 = vpop.f32.mrb[0].mxu0
  %v184 = vpop.f32.mrb[0].mxu0
  %v185 = vpop.f32.mrb[0].mxu0
  %186 = vdwg.mxu0
  %v187 = vadd.f32 %v123, %v182
  %v188 = vxor.u32 %v187, 2147483648
  %v189 = vmul.f32 %v188, 1.442695
  %v190 = vpow.pop %v189
  %v191 = vadd.f32 %v190, 1.0
  %v192 = vrcp.pop %v191
  %v193 = vmul.f32 1.0, %v192
  %195 = vrot.lane.b32.xlu0 %v182, 64
  %v196 = vpop.permute.xlu0 %195
  %v198 = vmul.f32 %v193, %v196
  %200 = vrot.lane.b32.xlu0 %v198, 64
  %v201 = vpop.permute.xlu0 %200
  %v203 = vadd.f32 %v123, %v201
  %v204 = vtanh.pop %v203
  %v205 = vsub.f32 1.0, %v193
  %207 = vrot.lane.b32.xlu0 %v204, 96
  %v208 = vpop.permute.xlu0 %207
  %v210 = vmul.f32 %v205, %v208
  %212 = vrot.lane.b32.xlu0 %v55, 32
  %v213 = vpop.permute.xlu0 %212
  %v215 = vmul.f32 %v193, %v213
  %v216 = vadd.f32 %v210, %v215
  %218 = vrot.lane.b32.xlu0 %v216, 96
  %v219 = vpop.permute.xlu0 %218
  %vm221 = vcmask 254976
  %222 = vst.msk [vmem:[#allocation2] sm:$0x3] %vm221, %v219
  %223 = vst.msk [vmem:[#allocation3] sm:$0x3] %vm221, %v219
  %s224 = scalar_lea.vmem %s0, 2
  %v225 = vld [vmem:[%s224] sm:$0x3]
  %s226 = scalar_lea.vmem %s1, 2
  %v227 = vld [vmem:[%s226] sm:$0x3]
  %v228 = vld [vmem:[#allocation2] sm:$0x3]
  %v229 = vpack.c.bf16 %v225, %v225
  %231 = vset.pattern.permute.xlu0 0
  %232 = vperm.xlu0 %231, %v227
  %v233 = vpop.permute.xlu0 %232
  %v235 = vmul.f32 %v233, %v66
  %v237 = vsel %vm69, %v229, 0
  %239 = vmatprep.subr.bf16.mxu0 0
  %240 = vmatpush1.bf16.msra.mxu0 %v75
  %241 = vmatprep.subr.bf16.mxu0 0
  %242 = vmatpush1.bf16.msra.mxu0 0
  %243 = vmatprep.subr.bf16.mxu0 0
  %244 = vmatpush1.bf16.msra.mxu0 0
  %245 = vmatprep.subr.bf16.mxu0 0
  %246 = vmatpush1.bf16.msra.mxu0 0
  %247 = vmatprep.subr.bf16.mxu0 0
  %248 = vmatpush1.bf16.msra.mxu0 0
  %249 = vmatprep.subr.bf16.mxu0 0
  %250 = vmatpush1.bf16.msra.mxu0 0
  %251 = vmatprep.subr.bf16.mxu0 0
  %252 = vmatpush1.bf16.msra.mxu0 0
  %253 = vmatprep.subr.bf16.mxu0 0
  %254 = vmatpush1.bf16.msra.mxu0 0
  %255 = vmatprep.subr.bf16.mxu0 0
  %256 = vmatpush1.bf16.msra.mxu0 0
  %257 = vmatprep.subr.bf16.mxu0 0
  %258 = vmatpush1.bf16.msra.mxu0 0
  %259 = vmatprep.subr.bf16.mxu0 0
  %260 = vmatpush1.bf16.msra.mxu0 0
  %261 = vmatprep.subr.bf16.mxu0 0
  %262 = vmatpush1.bf16.msra.mxu0 0
  %263 = vmatprep.subr.bf16.mxu0 0
  %264 = vmatpush1.bf16.msra.mxu0 0
  %265 = vmatprep.subr.bf16.mxu0 0
  %266 = vmatpush1.bf16.msra.mxu0 0
  %267 = vmatprep.subr.bf16.mxu0 0
  %268 = vmatpush1.bf16.msra.mxu0 0
  %269 = vmatprep.subr.bf16.mxu0 0
  %270 = vmatpush1.bf16.msra.mxu0 0
  %271 = vmatprep.mubr.bf16.mxu0 0
  %272 = vmatmul.mubr.bf16.gmra.mrb[0].mxu0 %v237
  %v273 = vpop.f32.mrb[0].mxu0
  %v274 = vadd.f32 %v235, %v273
  %v275 = vpop.f32.mrb[0].mxu0
  %v276 = vpop.f32.mrb[0].mxu0
  %v277 = vpop.f32.mrb[0].mxu0
  %278 = vdwg.mxu0
  %v279 = vadd.f32 %v274, %v121
  %v280 = vpack.c.bf16 %v228, %v228
  %v282 = vsel %vm143, %v280, 0
  %284 = vmatprep.subr.bf16.mxu0 0
  %285 = vmatpush1.bf16.msra.mxu0 %v139
  %286 = vmatprep.subr.bf16.mxu0 0
  %287 = vmatpush1.bf16.msra.mxu0 %v140
  %288 = vmatprep.subr.bf16.mxu0 0
  %289 = vmatpush1.bf16.msra.mxu0 0
  %290 = vmatprep.subr.bf16.mxu0 0
  %291 = vmatpush1.bf16.msra.mxu0 0
  %292 = vmatprep.subr.bf16.mxu0 0
  %293 = vmatpush1.bf16.msra.mxu0 0
  %294 = vmatprep.subr.bf16.mxu0 0
  %295 = vmatpush1.bf16.msra.mxu0 0
  %296 = vmatprep.subr.bf16.mxu0 0
  %297 = vmatpush1.bf16.msra.mxu0 0
  %298 = vmatprep.subr.bf16.mxu0 0
  %299 = vmatpush1.bf16.msra.mxu0 0
  %300 = vmatprep.subr.bf16.mxu0 0
  %301 = vmatpush1.bf16.msra.mxu0 0
  %302 = vmatprep.subr.bf16.mxu0 0
  %303 = vmatpush1.bf16.msra.mxu0 0
  %304 = vmatprep.subr.bf16.mxu0 0
  %305 = vmatpush1.bf16.msra.mxu0 0
  %306 = vmatprep.subr.bf16.mxu0 0
  %307 = vmatpush1.bf16.msra.mxu0 0
  %308 = vmatprep.subr.bf16.mxu0 0
  %309 = vmatpush1.bf16.msra.mxu0 0
  %310 = vmatprep.subr.bf16.mxu0 0
  %311 = vmatpush1.bf16.msra.mxu0 0
  %312 = vmatprep.subr.bf16.mxu0 0
  %313 = vmatpush1.bf16.msra.mxu0 0
  %314 = vmatprep.subr.bf16.mxu0 0
  %315 = vmatpush1.bf16.msra.mxu0 0
  %316 = vmatprep.mubr.bf16.mxu0 0
  %317 = vmatmul.mubr.bf16.gmra.mrb[0].mxu0 %v282
  %v318 = vpop.f32.mrb[0].mxu0
  %v319 = vadd.f32 %v129, %v318
  %v320 = vpop.f32.mrb[0].mxu0
  %v321 = vpop.f32.mrb[0].mxu0
  %v322 = vpop.f32.mrb[0].mxu0
  %323 = vdwg.mxu0
  %v324 = vadd.f32 %v279, %v319
  %v325 = vxor.u32 %v324, 2147483648
  %v326 = vmul.f32 %v325, 1.442695
  %v327 = vpow.pop %v326
  %v328 = vadd.f32 %v327, 1.0
  %v329 = vrcp.pop %v328
  %v330 = vmul.f32 1.0, %v329
  %332 = vrot.lane.b32.xlu0 %v319, 64
  %v333 = vpop.permute.xlu0 %332
  %v335 = vmul.f32 %v330, %v333
  %337 = vrot.lane.b32.xlu0 %v335, 64
  %v338 = vpop.permute.xlu0 %337
  %v340 = vadd.f32 %v279, %v338
  %v341 = vtanh.pop %v340
  %v342 = vsub.f32 1.0, %v330
  %344 = vrot.lane.b32.xlu0 %v341, 96
  %v345 = vpop.permute.xlu0 %344
  %v347 = vmul.f32 %v342, %v345
  %349 = vrot.lane.b32.xlu0 %v228, 32
  %v350 = vpop.permute.xlu0 %349
  %v352 = vmul.f32 %v330, %v350
  %v353 = vadd.f32 %v347, %v352
  %355 = vrot.lane.b32.xlu0 %v353, 96
  %v356 = vpop.permute.xlu0 %355
  %358 = vst.msk [vmem:[#allocation2] sm:$0x3] %vm221, %v356
  %s359 = scalar_lea.vmem [#allocation3], 2
  %360 = vst.msk [vmem:[%s359] sm:$0x3] %vm221, %v356
  %s361 = scalar_lea.vmem %s0, 4
  %v362 = vld [vmem:[%s361] sm:$0x3]
  %s363 = scalar_lea.vmem %s1, 4
  %v364 = vld [vmem:[%s363] sm:$0x3]
  %v365 = vld [vmem:[#allocation2] sm:$0x3]
  %v366 = vpack.c.bf16 %v362, %v362
  %368 = vset.pattern.permute.xlu0 0
  %369 = vperm.xlu0 %368, %v364
  %v370 = vpop.permute.xlu0 %369
  %v372 = vmul.f32 %v370, %v66
  %v374 = vsel %vm69, %v366, 0
  %376 = vmatprep.subr.bf16.mxu0 0
  %377 = vmatpush1.bf16.msra.mxu0 %v75
  %378 = vmatprep.subr.bf16.mxu0 0
  %379 = vmatpush1.bf16.msra.mxu0 0
  %380 = vmatprep.subr.bf16.mxu0 0
  %381 = vmatpush1.bf16.msra.mxu0 0
  %382 = vmatprep.subr.bf16.mxu0 0
  %383 = vmatpush1.bf16.msra.mxu0 0
  %384 = vmatprep.subr.bf16.mxu0 0
  %385 = vmatpush1.bf16.msra.mxu0 0
  %386 = vmatprep.subr.bf16.mxu0 0
  %387 = vmatpush1.bf16.msra.mxu0 0
  %388 = vmatprep.subr.bf16.mxu0 0
  %389 = vmatpush1.bf16.msra.mxu0 0
  %390 = vmatprep.subr.bf16.mxu0 0
  %391 = vmatpush1.bf16.msra.mxu0 0
  %392 = vmatprep.subr.bf16.mxu0 0
  %393 = vmatpush1.bf16.msra.mxu0 0
  %394 = vmatprep.subr.bf16.mxu0 0
  %395 = vmatpush1.bf16.msra.mxu0 0
  %396 = vmatprep.subr.bf16.mxu0 0
  %397 = vmatpush1.bf16.msra.mxu0 0
  %398 = vmatprep.subr.bf16.mxu0 0
  %399 = vmatpush1.bf16.msra.mxu0 0
  %400 = vmatprep.subr.bf16.mxu0 0
  %401 = vmatpush1.bf16.msra.mxu0 0
  %402 = vmatprep.subr.bf16.mxu0 0
  %403 = vmatpush1.bf16.msra.mxu0 0
  %404 = vmatprep.subr.bf16.mxu0 0
  %405 = vmatpush1.bf16.msra.mxu0 0
  %406 = vmatprep.subr.bf16.mxu0 0
  %407 = vmatpush1.bf16.msra.mxu0 0
  %408 = vmatprep.mubr.bf16.mxu0 0
  %409 = vmatmul.mubr.bf16.gmra.mrb[0].mxu0 %v374
  %v410 = vpop.f32.mrb[0].mxu0
  %v411 = vadd.f32 %v372, %v410
  %v412 = vpop.f32.mrb[0].mxu0
  %v413 = vpop.f32.mrb[0].mxu0
  %v414 = vpop.f32.mrb[0].mxu0
  %415 = vdwg.mxu0
  %v416 = vadd.f32 %v411, %v121
  %v417 = vpack.c.bf16 %v365, %v365
  %v419 = vsel %vm143, %v417, 0
  %421 = vmatprep.subr.bf16.mxu0 0
  %422 = vmatpush1.bf16.msra.mxu0 %v139
  %423 = vmatprep.subr.bf16.mxu0 0
  %424 = vmatpush1.bf16.msra.mxu0 %v140
  %425 = vmatprep.subr.bf16.mxu0 0
  %426 = vmatpush1.bf16.msra.mxu0 0
  %427 = vmatprep.subr.bf16.mxu0 0
  %428 = vmatpush1.bf16.msra.mxu0 0
  %429 = vmatprep.subr.bf16.mxu0 0
  %430 = vmatpush1.bf16.msra.mxu0 0
  %431 = vmatprep.subr.bf16.mxu0 0
  %432 = vmatpush1.bf16.msra.mxu0 0
  %433 = vmatprep.subr.bf16.mxu0 0
  %434 = vmatpush1.bf16.msra.mxu0 0
  %435 = vmatprep.subr.bf16.mxu0 0
  %436 = vmatpush1.bf16.msra.mxu0 0
  %437 = vmatprep.subr.bf16.mxu0 0
  %438 = vmatpush1.bf16.msra.mxu0 0
  %439 = vmatprep.subr.bf16.mxu0 0
  %440 = vmatpush1.bf16.msra.mxu0 0
  %441 = vmatprep.subr.bf16.mxu0 0
  %442 = vmatpush1.bf16.msra.mxu0 0
  %443 = vmatprep.subr.bf16.mxu0 0
  %444 = vmatpush1.bf16.msra.mxu0 0
  %445 = vmatprep.subr.bf16.mxu0 0
  %446 = vmatpush1.bf16.msra.mxu0 0
  %447 = vmatprep.subr.bf16.mxu0 0
  %448 = vmatpush1.bf16.msra.mxu0 0
  %449 = vmatprep.subr.bf16.mxu0 0
  %450 = vmatpush1.bf16.msra.mxu0 0
  %451 = vmatprep.subr.bf16.mxu0 0
  %452 = vmatpush1.bf16.msra.mxu0 0
  %453 = vmatprep.mubr.bf16.mxu0 0
  %454 = vmatmul.mubr.bf16.gmra.mrb[0].mxu0 %v419
  %v455 = vpop.f32.mrb[0].mxu0
  %v456 = vadd.f32 %v129, %v455
  %v457 = vpop.f32.mrb[0].mxu0
  %v458 = vpop.f32.mrb[0].mxu0
  %v459 = vpop.f32.mrb[0].mxu0
  %460 = vdwg.mxu0
  %v461 = vadd.f32 %v416, %v456
  %v462 = vxor.u32 %v461, 2147483648
  %v463 = vmul.f32 %v462, 1.442695
  %v464 = vpow.pop %v463
  %v465 = vadd.f32 %v464, 1.0
  %v466 = vrcp.pop %v465
  %v467 = vmul.f32 1.0, %v466
  %469 = vrot.lane.b32.xlu0 %v456, 64
  %v470 = vpop.permute.xlu0 %469
  %v472 = vmul.f32 %v467, %v470
  %474 = vrot.lane.b32.xlu0 %v472, 64
  %v475 = vpop.permute.xlu0 %474
  %v477 = vadd.f32 %v416, %v475
  %v478 = vtanh.pop %v477
  %v479 = vsub.f32 1.0, %v467
  %481 = vrot.lane.b32.xlu0 %v478, 96
  %v482 = vpop.permute.xlu0 %481
  %v484 = vmul.f32 %v479, %v482
  %486 = vrot.lane.b32.xlu0 %v365, 32
  %v487 = vpop.permute.xlu0 %486
  %v489 = vmul.f32 %v467, %v487
  %v490 = vadd.f32 %v484, %v489
  %492 = vrot.lane.b32.xlu0 %v490, 96
  %v493 = vpop.permute.xlu0 %492
  %495 = vst.msk [vmem:[#allocation2] sm:$0x3] %vm221, %v493
  %s496 = scalar_lea.vmem [#allocation3], 4
  %497 = vst.msk [vmem:[%s496] sm:$0x3] %vm221, %v493
  %s498 = scalar_lea.vmem %s0, 6
  %v499 = vld [vmem:[%s498] sm:$0x3]
  %s500 = scalar_lea.vmem %s1, 6
  %v501 = vld [vmem:[%s500] sm:$0x3]
  %v502 = vld [vmem:[#allocation2] sm:$0x3]
  %v503 = vpack.c.bf16 %v499, %v499
  %505 = vset.pattern.permute.xlu0 0
  %506 = vperm.xlu0 %505, %v501
  %v507 = vpop.permute.xlu0 %506
  %v509 = vmul.f32 %v507, %v66
  %v511 = vsel %vm69, %v503, 0
  %513 = vmatprep.subr.bf16.mxu0 0
  %514 = vmatpush1.bf16.msra.mxu0 %v75
  %515 = vmatprep.subr.bf16.mxu0 0
  %516 = vmatpush1.bf16.msra.mxu0 0
  %517 = vmatprep.subr.bf16.mxu0 0
  %518 = vmatpush1.bf16.msra.mxu0 0
  %519 = vmatprep.subr.bf16.mxu0 0
  %520 = vmatpush1.bf16.msra.mxu0 0
  %521 = vmatprep.subr.bf16.mxu0 0
  %522 = vmatpush1.bf16.msra.mxu0 0
  %523 = vmatprep.subr.bf16.mxu0 0
  %524 = vmatpush1.bf16.msra.mxu0 0
  %525 = vmatprep.subr.bf16.mxu0 0
  %526 = vmatpush1.bf16.msra.mxu0 0
  %527 = vmatprep.subr.bf16.mxu0 0
  %528 = vmatpush1.bf16.msra.mxu0 0
  %529 = vmatprep.subr.bf16.mxu0 0
  %530 = vmatpush1.bf16.msra.mxu0 0
  %531 = vmatprep.subr.bf16.mxu0 0
  %532 = vmatpush1.bf16.msra.mxu0 0
  %533 = vmatprep.subr.bf16.mxu0 0
  %534 = vmatpush1.bf16.msra.mxu0 0
  %535 = vmatprep.subr.bf16.mxu0 0
  %536 = vmatpush1.bf16.msra.mxu0 0
  %537 = vmatprep.subr.bf16.mxu0 0
  %538 = vmatpush1.bf16.msra.mxu0 0
  %539 = vmatprep.subr.bf16.mxu0 0
  %540 = vmatpush1.bf16.msra.mxu0 0
  %541 = vmatprep.subr.bf16.mxu0 0
  %542 = vmatpush1.bf16.msra.mxu0 0
  %543 = vmatprep.subr.bf16.mxu0 0
  %544 = vmatpush1.bf16.msra.mxu0 0
  %545 = vmatprep.mubr.bf16.mxu0 0
  %546 = vmatmul.mubr.bf16.gmra.mrb[0].mxu0 %v511
  %v547 = vpop.f32.mrb[0].mxu0
  %v548 = vadd.f32 %v509, %v547
  %v549 = vpop.f32.mrb[0].mxu0
  %v550 = vpop.f32.mrb[0].mxu0
  %v551 = vpop.f32.mrb[0].mxu0
  %552 = vdwg.mxu0
  %v553 = vadd.f32 %v548, %v121
  %v554 = vpack.c.bf16 %v502, %v502
  %v556 = vsel %vm143, %v554, 0
  %558 = vmatprep.subr.bf16.mxu0 0
  %559 = vmatpush1.bf16.msra.mxu0 %v139
  %560 = vmatprep.subr.bf16.mxu0 0
  %561 = vmatpush1.bf16.msra.mxu0 %v140
  %562 = vmatprep.subr.bf16.mxu0 0
  %563 = vmatpush1.bf16.msra.mxu0 0
  %564 = vmatprep.subr.bf16.mxu0 0
  %565 = vmatpush1.bf16.msra.mxu0 0
  %566 = vmatprep.subr.bf16.mxu0 0
  %567 = vmatpush1.bf16.msra.mxu0 0
  %568 = vmatprep.subr.bf16.mxu0 0
  %569 = vmatpush1.bf16.msra.mxu0 0
  %570 = vmatprep.subr.bf16.mxu0 0
  %571 = vmatpush1.bf16.msra.mxu0 0
  %572 = vmatprep.subr.bf16.mxu0 0
  %573 = vmatpush1.bf16.msra.mxu0 0
  %574 = vmatprep.subr.bf16.mxu0 0
  %575 = vmatpush1.bf16.msra.mxu0 0
  %576 = vmatprep.subr.bf16.mxu0 0
  %577 = vmatpush1.bf16.msra.mxu0 0
  %578 = vmatprep.subr.bf16.mxu0 0
  %579 = vmatpush1.bf16.msra.mxu0 0
  %580 = vmatprep.subr.bf16.mxu0 0
  %581 = vmatpush1.bf16.msra.mxu0 0
  %582 = vmatprep.subr.bf16.mxu0 0
  %583 = vmatpush1.bf16.msra.mxu0 0
  %584 = vmatprep.subr.bf16.mxu0 0
  %585 = vmatpush1.bf16.msra.mxu0 0
  %586 = vmatprep.subr.bf16.mxu0 0
  %587 = vmatpush1.bf16.msra.mxu0 0
  %588 = vmatprep.subr.bf16.mxu0 0
  %589 = vmatpush1.bf16.msra.mxu0 0
  %590 = vmatprep.mubr.bf16.mxu0 0
  %591 = vmatmul.mubr.bf16.gmra.mrb[0].mxu0 %v556
  %v592 = vpop.f32.mrb[0].mxu0
  %v593 = vadd.f32 %v129, %v592
  %v594 = vpop.f32.mrb[0].mxu0
  %v595 = vpop.f32.mrb[0].mxu0
  %v596 = vpop.f32.mrb[0].mxu0
  %597 = vdwg.mxu0
  %v598 = vadd.f32 %v553, %v593
  %v599 = vxor.u32 %v598, 2147483648
  %v600 = vmul.f32 %v599, 1.442695
  %v601 = vpow.pop %v600
  %v602 = vadd.f32 %v601, 1.0
  %v603 = vrcp.pop %v602
  %v604 = vmul.f32 1.0, %v603
  %606 = vrot.lane.b32.xlu0 %v593, 64
  %v607 = vpop.permute.xlu0 %606
  %v609 = vmul.f32 %v604, %v607
  %611 = vrot.lane.b32.xlu0 %v609, 64
  %v612 = vpop.permute.xlu0 %611
  %v614 = vadd.f32 %v553, %v612
  %v615 = vtanh.pop %v614
  %v616 = vsub.f32 1.0, %v604
  %618 = vrot.lane.b32.xlu0 %v615, 96
  %v619 = vpop.permute.xlu0 %618
  %v621 = vmul.f32 %v616, %v619
  %623 = vrot.lane.b32.xlu0 %v502, 32
  %v624 = vpop.permute.xlu0 %623
  %v626 = vmul.f32 %v604, %v624
  %v627 = vadd.f32 %v621, %v626
  %629 = vrot.lane.b32.xlu0 %v627, 96
  %v630 = vpop.permute.xlu0 %629
  %632 = vst.msk [vmem:[#allocation2] sm:$0x3] %vm221, %v630
  %s633 = scalar_lea.vmem [#allocation3], 6
  %634 = vst.msk [vmem:[%s633] sm:$0x3] %vm221, %v630
  %s635 = scalar_lea.vmem %s0, 8
  %v636 = vld [vmem:[%s635] sm:$0x3]
  %s637 = scalar_lea.vmem %s1, 8
  %v638 = vld [vmem:[%s637] sm:$0x3]
  %v639 = vld [vmem:[#allocation2] sm:$0x3]
  %v640 = vpack.c.bf16 %v636, %v636
  %642 = vset.pattern.permute.xlu0 0
  %643 = vperm.xlu0 %642, %v638
  %v644 = vpop.permute.xlu0 %643
  %v646 = vmul.f32 %v644, %v66
  %v648 = vsel %vm69, %v640, 0
  %650 = vmatprep.subr.bf16.mxu0 0
  %651 = vmatpush1.bf16.msra.mxu0 %v75
  %652 = vmatprep.subr.bf16.mxu0 0
  %653 = vmatpush1.bf16.msra.mxu0 0
  %654 = vmatprep.subr.bf16.mxu0 0
  %655 = vmatpush1.bf16.msra.mxu0 0
  %656 = vmatprep.subr.bf16.mxu0 0
  %657 = vmatpush1.bf16.msra.mxu0 0
  %658 = vmatprep.subr.bf16.mxu0 0
  %659 = vmatpush1.bf16.msra.mxu0 0
  %660 = vmatprep.subr.bf16.mxu0 0
  %661 = vmatpush1.bf16.msra.mxu0 0
  %662 = vmatprep.subr.bf16.mxu0 0
  %663 = vmatpush1.bf16.msra.mxu0 0
  %664 = vmatprep.subr.bf16.mxu0 0
  %665 = vmatpush1.bf16.msra.mxu0 0
  %666 = vmatprep.subr.bf16.mxu0 0
  %667 = vmatpush1.bf16.msra.mxu0 0
  %668 = vmatprep.subr.bf16.mxu0 0
  %669 = vmatpush1.bf16.msra.mxu0 0
  %670 = vmatprep.subr.bf16.mxu0 0
  %671 = vmatpush1.bf16.msra.mxu0 0
  %672 = vmatprep.subr.bf16.mxu0 0
  %673 = vmatpush1.bf16.msra.mxu0 0
  %674 = vmatprep.subr.bf16.mxu0 0
  %675 = vmatpush1.bf16.msra.mxu0 0
  %676 = vmatprep.subr.bf16.mxu0 0
  %677 = vmatpush1.bf16.msra.mxu0 0
  %678 = vmatprep.subr.bf16.mxu0 0
  %679 = vmatpush1.bf16.msra.mxu0 0
  %680 = vmatprep.subr.bf16.mxu0 0
  %681 = vmatpush1.bf16.msra.mxu0 0
  %682 = vmatprep.mubr.bf16.mxu0 0
  %683 = vmatmul.mubr.bf16.gmra.mrb[0].mxu0 %v648
  %v684 = vpop.f32.mrb[0].mxu0
  %v685 = vadd.f32 %v646, %v684
  %v686 = vpop.f32.mrb[0].mxu0
  %v687 = vpop.f32.mrb[0].mxu0
  %v688 = vpop.f32.mrb[0].mxu0
  %689 = vdwg.mxu0
  %v690 = vadd.f32 %v685, %v121
  %v691 = vpack.c.bf16 %v639, %v639
  %v693 = vsel %vm143, %v691, 0
  %695 = vmatprep.subr.bf16.mxu0 0
  %696 = vmatpush1.bf16.msra.mxu0 %v139
  %697 = vmatprep.subr.bf16.mxu0 0
  %698 = vmatpush1.bf16.msra.mxu0 %v140
  %699 = vmatprep.subr.bf16.mxu0 0
  %700 = vmatpush1.bf16.msra.mxu0 0
  %701 = vmatprep.subr.bf16.mxu0 0
  %702 = vmatpush1.bf16.msra.mxu0 0
  %703 = vmatprep.subr.bf16.mxu0 0
  %704 = vmatpush1.bf16.msra.mxu0 0
  %705 = vmatprep.subr.bf16.mxu0 0
  %706 = vmatpush1.bf16.msra.mxu0 0
  %707 = vmatprep.subr.bf16.mxu0 0
  %708 = vmatpush1.bf16.msra.mxu0 0
  %709 = vmatprep.subr.bf16.mxu0 0
  %710 = vmatpush1.bf16.msra.mxu0 0
  %711 = vmatprep.subr.bf16.mxu0 0
  %712 = vmatpush1.bf16.msra.mxu0 0
  %713 = vmatprep.subr.bf16.mxu0 0
  %714 = vmatpush1.bf16.msra.mxu0 0
  %715 = vmatprep.subr.bf16.mxu0 0
  %716 = vmatpush1.bf16.msra.mxu0 0
  %717 = vmatprep.subr.bf16.mxu0 0
  %718 = vmatpush1.bf16.msra.mxu0 0
  %719 = vmatprep.subr.bf16.mxu0 0
  %720 = vmatpush1.bf16.msra.mxu0 0
  %721 = vmatprep.subr.bf16.mxu0 0
  %722 = vmatpush1.bf16.msra.mxu0 0
  %723 = vmatprep.subr.bf16.mxu0 0
  %724 = vmatpush1.bf16.msra.mxu0 0
  %725 = vmatprep.subr.bf16.mxu0 0
  %726 = vmatpush1.bf16.msra.mxu0 0
  %727 = vmatprep.mubr.bf16.mxu0 0
  %728 = vmatmul.mubr.bf16.gmra.mrb[0].mxu0 %v693
  %v729 = vpop.f32.mrb[0].mxu0
  %v730 = vadd.f32 %v129, %v729
  %v731 = vpop.f32.mrb[0].mxu0
  %v732 = vpop.f32.mrb[0].mxu0
  %v733 = vpop.f32.mrb[0].mxu0
  %734 = vdwg.mxu0
  %v735 = vadd.f32 %v690, %v730
  %v736 = vxor.u32 %v735, 2147483648
  %v737 = vmul.f32 %v736, 1.442695
  %v738 = vpow.pop %v737
  %v739 = vadd.f32 %v738, 1.0
  %v740 = vrcp.pop %v739
  %v741 = vmul.f32 1.0, %v740
  %743 = vrot.lane.b32.xlu0 %v730, 64
  %v744 = vpop.permute.xlu0 %743
  %v746 = vmul.f32 %v741, %v744
  %748 = vrot.lane.b32.xlu0 %v746, 64
  %v749 = vpop.permute.xlu0 %748
  %v751 = vadd.f32 %v690, %v749
  %v752 = vtanh.pop %v751
  %v753 = vsub.f32 1.0, %v741
  %755 = vrot.lane.b32.xlu0 %v752, 96
  %v756 = vpop.permute.xlu0 %755
  %v758 = vmul.f32 %v753, %v756
  %760 = vrot.lane.b32.xlu0 %v639, 32
  %v761 = vpop.permute.xlu0 %760
  %v763 = vmul.f32 %v741, %v761
  %v764 = vadd.f32 %v758, %v763
  %766 = vrot.lane.b32.xlu0 %v764, 96
  %v767 = vpop.permute.xlu0 %766
  %769 = vst.msk [vmem:[#allocation2] sm:$0x3] %vm221, %v767
  %s770 = scalar_lea.vmem [#allocation3], 8
  %771 = vst.msk [vmem:[%s770] sm:$0x3] %vm221, %v767
  %s772 = scalar_lea.vmem %s0, 10
  %v773 = vld [vmem:[%s772] sm:$0x3]
  %s774 = scalar_lea.vmem %s1, 10
  %v775 = vld [vmem:[%s774] sm:$0x3]
  %v776 = vld [vmem:[#allocation2] sm:$0x3]
  %v777 = vpack.c.bf16 %v773, %v773
  %779 = vset.pattern.permute.xlu0 0
  %780 = vperm.xlu0 %779, %v775
  %v781 = vpop.permute.xlu0 %780
  %v783 = vmul.f32 %v781, %v66
  %v785 = vsel %vm69, %v777, 0
  %787 = vmatprep.subr.bf16.mxu0 0
  %788 = vmatpush1.bf16.msra.mxu0 %v75
  %789 = vmatprep.subr.bf16.mxu0 0
  %790 = vmatpush1.bf16.msra.mxu0 0
  %791 = vmatprep.subr.bf16.mxu0 0
  %792 = vmatpush1.bf16.msra.mxu0 0
  %793 = vmatprep.subr.bf16.mxu0 0
  %794 = vmatpush1.bf16.msra.mxu0 0
  %795 = vmatprep.subr.bf16.mxu0 0
  %796 = vmatpush1.bf16.msra.mxu0 0
  %797 = vmatprep.subr.bf16.mxu0 0
  %798 = vmatpush1.bf16.msra.mxu0 0
  %799 = vmatprep.subr.bf16.mxu0 0
  %800 = vmatpush1.bf16.msra.mxu0 0
  %801 = vmatprep.subr.bf16.mxu0 0
  %802 = vmatpush1.bf16.msra.mxu0 0
  %803 = vmatprep.subr.bf16.mxu0 0
  %804 = vmatpush1.bf16.msra.mxu0 0
  %805 = vmatprep.subr.bf16.mxu0 0
  %806 = vmatpush1.bf16.msra.mxu0 0
  %807 = vmatprep.subr.bf16.mxu0 0
  %808 = vmatpush1.bf16.msra.mxu0 0
  %809 = vmatprep.subr.bf16.mxu0 0
  %810 = vmatpush1.bf16.msra.mxu0 0
  %811 = vmatprep.subr.bf16.mxu0 0
  %812 = vmatpush1.bf16.msra.mxu0 0
  %813 = vmatprep.subr.bf16.mxu0 0
  %814 = vmatpush1.bf16.msra.mxu0 0
  %815 = vmatprep.subr.bf16.mxu0 0
  %816 = vmatpush1.bf16.msra.mxu0 0
  %817 = vmatprep.subr.bf16.mxu0 0
  %818 = vmatpush1.bf16.msra.mxu0 0
  %819 = vmatprep.mubr.bf16.mxu0 0
  %820 = vmatmul.mubr.bf16.gmra.mrb[0].mxu0 %v785
  %v821 = vpop.f32.mrb[0].mxu0
  %v822 = vadd.f32 %v783, %v821
  %v823 = vpop.f32.mrb[0].mxu0
  %v824 = vpop.f32.mrb[0].mxu0
  %v825 = vpop.f32.mrb[0].mxu0
  %826 = vdwg.mxu0
  %v827 = vadd.f32 %v822, %v121
  %v828 = vpack.c.bf16 %v776, %v776
  %v830 = vsel %vm143, %v828, 0
  %832 = vmatprep.subr.bf16.mxu0 0
  %833 = vmatpush1.bf16.msra.mxu0 %v139
  %834 = vmatprep.subr.bf16.mxu0 0
  %835 = vmatpush1.bf16.msra.mxu0 %v140
  %836 = vmatprep.subr.bf16.mxu0 0
  %837 = vmatpush1.bf16.msra.mxu0 0
  %838 = vmatprep.subr.bf16.mxu0 0
  %839 = vmatpush1.bf16.msra.mxu0 0
  %840 = vmatprep.subr.bf16.mxu0 0
  %841 = vmatpush1.bf16.msra.mxu0 0
  %842 = vmatprep.subr.bf16.mxu0 0
  %843 = vmatpush1.bf16.msra.mxu0 0
  %844 = vmatprep.subr.bf16.mxu0 0
  %845 = vmatpush1.bf16.msra.mxu0 0
  %846 = vmatprep.subr.bf16.mxu0 0
  %847 = vmatpush1.bf16.msra.mxu0 0
  %848 = vmatprep.subr.bf16.mxu0 0
  %849 = vmatpush1.bf16.msra.mxu0 0
  %850 = vmatprep.subr.bf16.mxu0 0
  %851 = vmatpush1.bf16.msra.mxu0 0
  %852 = vmatprep.subr.bf16.mxu0 0
  %853 = vmatpush1.bf16.msra.mxu0 0
  %854 = vmatprep.subr.bf16.mxu0 0
  %855 = vmatpush1.bf16.msra.mxu0 0
  %856 = vmatprep.subr.bf16.mxu0 0
  %857 = vmatpush1.bf16.msra.mxu0 0
  %858 = vmatprep.subr.bf16.mxu0 0
  %859 = vmatpush1.bf16.msra.mxu0 0
  %860 = vmatprep.subr.bf16.mxu0 0
  %861 = vmatpush1.bf16.msra.mxu0 0
  %862 = vmatprep.subr.bf16.mxu0 0
  %863 = vmatpush1.bf16.msra.mxu0 0
  %864 = vmatprep.mubr.bf16.mxu0 0
  %865 = vmatmul.mubr.bf16.gmra.mrb[0].mxu0 %v830
  %v866 = vpop.f32.mrb[0].mxu0
  %v867 = vadd.f32 %v129, %v866
  %v868 = vpop.f32.mrb[0].mxu0
  %v869 = vpop.f32.mrb[0].mxu0
  %v870 = vpop.f32.mrb[0].mxu0
  %871 = vdwg.mxu0
  %v872 = vadd.f32 %v827, %v867
  %v873 = vxor.u32 %v872, 2147483648
  %v874 = vmul.f32 %v873, 1.442695
  %v875 = vpow.pop %v874
  %v876 = vadd.f32 %v875, 1.0
  %v877 = vrcp.pop %v876
  %v878 = vmul.f32 1.0, %v877
  %880 = vrot.lane.b32.xlu0 %v867, 64
  %v881 = vpop.permute.xlu0 %880
  %v883 = vmul.f32 %v878, %v881
  %885 = vrot.lane.b32.xlu0 %v883, 64
  %v886 = vpop.permute.xlu0 %885
  %v888 = vadd.f32 %v827, %v886
  %v889 = vtanh.pop %v888
  %v890 = vsub.f32 1.0, %v878
  %892 = vrot.lane.b32.xlu0 %v889, 96
  %v893 = vpop.permute.xlu0 %892
  %v895 = vmul.f32 %v890, %v893
  %897 = vrot.lane.b32.xlu0 %v776, 32
  %v898 = vpop.permute.xlu0 %897
  %v900 = vmul.f32 %v878, %v898
  %v901 = vadd.f32 %v895, %v900
  %903 = vrot.lane.b32.xlu0 %v901, 96
  %v904 = vpop.permute.xlu0 %903
  %906 = vst.msk [vmem:[#allocation2] sm:$0x3] %vm221, %v904
  %s907 = scalar_lea.vmem [#allocation3], 10
  %908 = vst.msk [vmem:[%s907] sm:$0x3] %vm221, %v904
  %s909 = scalar_lea.vmem %s0, 12
  %v910 = vld [vmem:[%s909] sm:$0x3]
  %s911 = scalar_lea.vmem %s1, 12
  %v912 = vld [vmem:[%s911] sm:$0x3]
  %v913 = vld [vmem:[#allocation2] sm:$0x3]
  %v914 = vpack.c.bf16 %v910, %v910
  %916 = vset.pattern.permute.xlu0 0
  %917 = vperm.xlu0 %916, %v912
  %v918 = vpop.permute.xlu0 %917
  %v920 = vmul.f32 %v918, %v66
  %v922 = vsel %vm69, %v914, 0
  %924 = vmatprep.subr.bf16.mxu0 0
  %925 = vmatpush1.bf16.msra.mxu0 %v75
  %926 = vmatprep.subr.bf16.mxu0 0
  %927 = vmatpush1.bf16.msra.mxu0 0
  %928 = vmatprep.subr.bf16.mxu0 0
  %929 = vmatpush1.bf16.msra.mxu0 0
  %930 = vmatprep.subr.bf16.mxu0 0
  %931 = vmatpush1.bf16.msra.mxu0 0
  %932 = vmatprep.subr.bf16.mxu0 0
  %933 = vmatpush1.bf16.msra.mxu0 0
  %934 = vmatprep.subr.bf16.mxu0 0
  %935 = vmatpush1.bf16.msra.mxu0 0
  %936 = vmatprep.subr.bf16.mxu0 0
  %937 = vmatpush1.bf16.msra.mxu0 0
  %938 = vmatprep.subr.bf16.mxu0 0
  %939 = vmatpush1.bf16.msra.mxu0 0
  %940 = vmatprep.subr.bf16.mxu0 0
  %941 = vmatpush1.bf16.msra.mxu0 0
  %942 = vmatprep.subr.bf16.mxu0 0
  %943 = vmatpush1.bf16.msra.mxu0 0
  %944 = vmatprep.subr.bf16.mxu0 0
  %945 = vmatpush1.bf16.msra.mxu0 0
  %946 = vmatprep.subr.bf16.mxu0 0
  %947 = vmatpush1.bf16.msra.mxu0 0
  %948 = vmatprep.subr.bf16.mxu0 0
  %949 = vmatpush1.bf16.msra.mxu0 0
  %950 = vmatprep.subr.bf16.mxu0 0
  %951 = vmatpush1.bf16.msra.mxu0 0
  %952 = vmatprep.subr.bf16.mxu0 0
  %953 = vmatpush1.bf16.msra.mxu0 0
  %954 = vmatprep.subr.bf16.mxu0 0
  %955 = vmatpush1.bf16.msra.mxu0 0
  %956 = vmatprep.mubr.bf16.mxu0 0
  %957 = vmatmul.mubr.bf16.gmra.mrb[0].mxu0 %v922
  %v958 = vpop.f32.mrb[0].mxu0
  %v959 = vadd.f32 %v920, %v958
  %v960 = vpop.f32.mrb[0].mxu0
  %v961 = vpop.f32.mrb[0].mxu0
  %v962 = vpop.f32.mrb[0].mxu0
  %963 = vdwg.mxu0
  %v964 = vadd.f32 %v959, %v121
  %v965 = vpack.c.bf16 %v913, %v913
  %v967 = vsel %vm143, %v965, 0
  %969 = vmatprep.subr.bf16.mxu0 0
  %970 = vmatpush1.bf16.msra.mxu0 %v139
  %971 = vmatprep.subr.bf16.mxu0 0
  %972 = vmatpush1.bf16.msra.mxu0 %v140
  %973 = vmatprep.subr.bf16.mxu0 0
  %974 = vmatpush1.bf16.msra.mxu0 0
  %975 = vmatprep.subr.bf16.mxu0 0
  %976 = vmatpush1.bf16.msra.mxu0 0
  %977 = vmatprep.subr.bf16.mxu0 0
  %978 = vmatpush1.bf16.msra.mxu0 0
  %979 = vmatprep.subr.bf16.mxu0 0
  %980 = vmatpush1.bf16.msra.mxu0 0
  %981 = vmatprep.subr.bf16.mxu0 0
  %982 = vmatpush1.bf16.msra.mxu0 0
  %983 = vmatprep.subr.bf16.mxu0 0
  %984 = vmatpush1.bf16.msra.mxu0 0
  %985 = vmatprep.subr.bf16.mxu0 0
  %986 = vmatpush1.bf16.msra.mxu0 0
  %987 = vmatprep.subr.bf16.mxu0 0
  %988 = vmatpush1.bf16.msra.mxu0 0
  %989 = vmatprep.subr.bf16.mxu0 0
  %990 = vmatpush1.bf16.msra.mxu0 0
  %991 = vmatprep.subr.bf16.mxu0 0
  %992 = vmatpush1.bf16.msra.mxu0 0
  %993 = vmatprep.subr.bf16.mxu0 0
  %994 = vmatpush1.bf16.msra.mxu0 0
  %995 = vmatprep.subr.bf16.mxu0 0
  %996 = vmatpush1.bf16.msra.mxu0 0
  %997 = vmatprep.subr.bf16.mxu0 0
  %998 = vmatpush1.bf16.msra.mxu0 0
  %999 = vmatprep.subr.bf16.mxu0 0
  %1000 = vmatpush1.bf16.msra.mxu0 0
  %1001 = vmatprep.mubr.bf16.mxu0 0
  %1002 = vmatmul.mubr.bf16.gmra.mrb[0].mxu0 %v967
  %v1003 = vpop.f32.mrb[0].mxu0
  %v1004 = vadd.f32 %v129, %v1003
  %v1005 = vpop.f32.mrb[0].mxu0
  %v1006 = vpop.f32.mrb[0].mxu0
  %v1007 = vpop.f32.mrb[0].mxu0
  %1008 = vdwg.mxu0
  %v1009 = vadd.f32 %v964, %v1004
  %v1010 = vxor.u32 %v1009, 2147483648
  %v1011 = vmul.f32 %v1010, 1.442695
  %v1012 = vpow.pop %v1011
  %v1013 = vadd.f32 %v1012, 1.0
  %v1014 = vrcp.pop %v1013
  %v1015 = vmul.f32 1.0, %v1014
  %1017 = vrot.lane.b32.xlu0 %v1004, 64
  %v1018 = vpop.permute.xlu0 %1017
  %v1020 = vmul.f32 %v1015, %v1018
  %1022 = vrot.lane.b32.xlu0 %v1020, 64
  %v1023 = vpop.permute.xlu0 %1022
  %v1025 = vadd.f32 %v964, %v1023
  %v1026 = vtanh.pop %v1025
  %v1027 = vsub.f32 1.0, %v1015
  %1029 = vrot.lane.b32.xlu0 %v1026, 96
  %v1030 = vpop.permute.xlu0 %1029
  %v1032 = vmul.f32 %v1027, %v1030
  %1034 = vrot.lane.b32.xlu0 %v913, 32
  %v1035 = vpop.permute.xlu0 %1034
  %v1037 = vmul.f32 %v1015, %v1035
  %v1038 = vadd.f32 %v1032, %v1037
  %1040 = vrot.lane.b32.xlu0 %v1038, 96
  %v1041 = vpop.permute.xlu0 %1040
  %1043 = vst.msk [vmem:[#allocation2] sm:$0x3] %vm221, %v1041
  %s1044 = scalar_lea.vmem [#allocation3], 12
  %1045 = vst.msk [vmem:[%s1044] sm:$0x3] %vm221, %v1041
  %s1046 = scalar_lea.vmem %s0, 14
  %v1047 = vld [vmem:[%s1046] sm:$0x3]
  %s1048 = scalar_lea.vmem %s1, 14
  %v1049 = vld [vmem:[%s1048] sm:$0x3]
  %v1050 = vld [vmem:[#allocation2] sm:$0x3]
  %v1051 = vpack.c.bf16 %v1047, %v1047
  %1053 = vset.pattern.permute.xlu0 0
  %1054 = vperm.xlu0 %1053, %v1049
  %v1055 = vpop.permute.xlu0 %1054
  %v1057 = vmul.f32 %v1055, %v66
  %v1059 = vsel %vm69, %v1051, 0
  %1061 = vmatprep.subr.bf16.mxu0 0
  %1062 = vmatpush1.bf16.msra.mxu0 %v75
  %1063 = vmatprep.subr.bf16.mxu0 0
  %1064 = vmatpush1.bf16.msra.mxu0 0
  %1065 = vmatprep.subr.bf16.mxu0 0
  %1066 = vmatpush1.bf16.msra.mxu0 0
  %1067 = vmatprep.subr.bf16.mxu0 0
  %1068 = vmatpush1.bf16.msra.mxu0 0
  %1069 = vmatprep.subr.bf16.mxu0 0
  %1070 = vmatpush1.bf16.msra.mxu0 0
  %1071 = vmatprep.subr.bf16.mxu0 0
  %1072 = vmatpush1.bf16.msra.mxu0 0
  %1073 = vmatprep.subr.bf16.mxu0 0
  %1074 = vmatpush1.bf16.msra.mxu0 0
  %1075 = vmatprep.subr.bf16.mxu0 0
  %1076 = vmatpush1.bf16.msra.mxu0 0
  %1077 = vmatprep.subr.bf16.mxu0 0
  %1078 = vmatpush1.bf16.msra.mxu0 0
  %1079 = vmatprep.subr.bf16.mxu0 0
  %1080 = vmatpush1.bf16.msra.mxu0 0
  %1081 = vmatprep.subr.bf16.mxu0 0
  %1082 = vmatpush1.bf16.msra.mxu0 0
  %1083 = vmatprep.subr.bf16.mxu0 0
  %1084 = vmatpush1.bf16.msra.mxu0 0
  %1085 = vmatprep.subr.bf16.mxu0 0
  %1086 = vmatpush1.bf16.msra.mxu0 0
  %1087 = vmatprep.subr.bf16.mxu0 0
  %1088 = vmatpush1.bf16.msra.mxu0 0
  %1089 = vmatprep.subr.bf16.mxu0 0
  %1090 = vmatpush1.bf16.msra.mxu0 0
  %1091 = vmatprep.subr.bf16.mxu0 0
  %1092 = vmatpush1.bf16.msra.mxu0 0
  %1093 = vmatprep.mubr.bf16.mxu0 0
  %1094 = vmatmul.mubr.bf16.gmra.mrb[0].mxu0 %v1059
  %v1095 = vpop.f32.mrb[0].mxu0
  %v1096 = vadd.f32 %v1057, %v1095
  %v1097 = vpop.f32.mrb[0].mxu0
  %v1098 = vpop.f32.mrb[0].mxu0
  %v1099 = vpop.f32.mrb[0].mxu0
  %1100 = vdwg.mxu0
  %v1101 = vadd.f32 %v1096, %v121
  %v1102 = vpack.c.bf16 %v1050, %v1050
  %v1104 = vsel %vm143, %v1102, 0
  %1106 = vmatprep.subr.bf16.mxu0 0
  %1107 = vmatpush1.bf16.msra.mxu0 %v139
  %1108 = vmatprep.subr.bf16.mxu0 0
  %1109 = vmatpush1.bf16.msra.mxu0 %v140
  %1110 = vmatprep.subr.bf16.mxu0 0
  %1111 = vmatpush1.bf16.msra.mxu0 0
  %1112 = vmatprep.subr.bf16.mxu0 0
  %1113 = vmatpush1.bf16.msra.mxu0 0
  %1114 = vmatprep.subr.bf16.mxu0 0
  %1115 = vmatpush1.bf16.msra.mxu0 0
  %1116 = vmatprep.subr.bf16.mxu0 0
  %1117 = vmatpush1.bf16.msra.mxu0 0
  %1118 = vmatprep.subr.bf16.mxu0 0
  %1119 = vmatpush1.bf16.msra.mxu0 0
  %1120 = vmatprep.subr.bf16.mxu0 0
  %1121 = vmatpush1.bf16.msra.mxu0 0
  %1122 = vmatprep.subr.bf16.mxu0 0
  %1123 = vmatpush1.bf16.msra.mxu0 0
  %1124 = vmatprep.subr.bf16.mxu0 0
  %1125 = vmatpush1.bf16.msra.mxu0 0
  %1126 = vmatprep.subr.bf16.mxu0 0
  %1127 = vmatpush1.bf16.msra.mxu0 0
  %1128 = vmatprep.subr.bf16.mxu0 0
  %1129 = vmatpush1.bf16.msra.mxu0 0
  %1130 = vmatprep.subr.bf16.mxu0 0
  %1131 = vmatpush1.bf16.msra.mxu0 0
  %1132 = vmatprep.subr.bf16.mxu0 0
  %1133 = vmatpush1.bf16.msra.mxu0 0
  %1134 = vmatprep.subr.bf16.mxu0 0
  %1135 = vmatpush1.bf16.msra.mxu0 0
  %1136 = vmatprep.subr.bf16.mxu0 0
  %1137 = vmatpush1.bf16.msra.mxu0 0
  %1138 = vmatprep.mubr.bf16.mxu0 0
  %1139 = vmatmul.mubr.bf16.gmra.mrb[0].mxu0 %v1104
  %v1140 = vpop.f32.mrb[0].mxu0
  %v1141 = vadd.f32 %v129, %v1140
  %v1142 = vpop.f32.mrb[0].mxu0
  %v1143 = vpop.f32.mrb[0].mxu0
  %v1144 = vpop.f32.mrb[0].mxu0
  %1145 = vdwg.mxu0
  %v1146 = vadd.f32 %v1101, %v1141
  %v1147 = vxor.u32 %v1146, 2147483648
  %v1148 = vmul.f32 %v1147, 1.442695
  %v1149 = vpow.pop %v1148
  %v1150 = vadd.f32 %v1149, 1.0
  %v1151 = vrcp.pop %v1150
  %v1152 = vmul.f32 1.0, %v1151
  %1154 = vrot.lane.b32.xlu0 %v1141, 64
  %v1155 = vpop.permute.xlu0 %1154
  %v1157 = vmul.f32 %v1152, %v1155
  %1159 = vrot.lane.b32.xlu0 %v1157, 64
  %v1160 = vpop.permute.xlu0 %1159
  %v1162 = vadd.f32 %v1101, %v1160
  %v1163 = vtanh.pop %v1162
  %v1164 = vsub.f32 1.0, %v1152
  %1166 = vrot.lane.b32.xlu0 %v1163, 96
  %v1167 = vpop.permute.xlu0 %1166
  %v1169 = vmul.f32 %v1164, %v1167
  %1171 = vrot.lane.b32.xlu0 %v1050, 32
  %v1172 = vpop.permute.xlu0 %1171
  %v1174 = vmul.f32 %v1152, %v1172
  %v1175 = vadd.f32 %v1169, %v1174
  %1177 = vrot.lane.b32.xlu0 %v1175, 96
  %v1178 = vpop.permute.xlu0 %1177
  %1180 = vst.msk [vmem:[#allocation2] sm:$0x3] %vm221, %v1178
  %s1181 = scalar_lea.vmem [#allocation3], 14
  %1182 = vst.msk [vmem:[%s1181] sm:$0x3] %vm221, %v1178
  %v1183 = vld [vmem:[#allocation3] sm:$0x3]
  %v1184 = vld [vmem:[#allocation3 + $0x2] sm:$0x3]
  %v1185 = vld [vmem:[#allocation3 + $0x4] sm:$0x3]
  %v1186 = vld [vmem:[#allocation3 + $0x6] sm:$0x3]
  %v1187 = vld [vmem:[#allocation3 + $0x8] sm:$0x3]
  %v1188 = vld [vmem:[#allocation3 + $0xa] sm:$0x3]
  %v1189 = vld [vmem:[#allocation3 + $0xc] sm:$0x3]
  %v1190 = vld [vmem:[#allocation3 + $0xe] sm:$0x3]
  %v1199 = vcombine.low %v1183, %v1184
  %v1200 = vcombine.low %v1185, %v1186
  %v1202 = vunpack.c.l.s4 1983009808
  %v1203 = vunpack.c.0.s8 %v1202
  %v1204 = vlaneseq
  %v1205 = vshrl.u32 %v1204, 7
  %v1206 = vsub.s32 %v1203, %v1205
  %v1207 = vrot.slane %v1199, %v1206
  %v1209 = vunpack.c.l.s4 1983009808
  %v1210 = vunpack.c.0.s8 %v1209
  %v1211 = vlaneseq
  %v1212 = vshrl.u32 %v1211, 7
  %v1213 = vsub.s32 %v1210, %v1212
  %v1214 = vrot.slane %v1200, %v1213
  %v1215 = vcombine.low %v1207, %v1214
  %v1216 = vcombine.low %v1187, %v1188
  %v1217 = vcombine.low %v1189, %v1190
  %v1219 = vunpack.c.l.s4 1983009808
  %v1220 = vunpack.c.0.s8 %v1219
  %v1221 = vlaneseq
  %v1222 = vshrl.u32 %v1221, 7
  %v1223 = vsub.s32 %v1220, %v1222
  %v1224 = vrot.slane %v1216, %v1223
  %v1226 = vunpack.c.l.s4 1983009808
  %v1227 = vunpack.c.0.s8 %v1226
  %v1228 = vlaneseq
  %v1229 = vshrl.u32 %v1228, 7
  %v1230 = vsub.s32 %v1227, %v1229
  %v1231 = vrot.slane %v1217, %v1230
  %v1232 = vcombine.low %v1224, %v1231
  %v1235 = vpack.c.bf16 %v1232, %v1215
  %v1236 = vld [vmem:[%s7] sm:$0xf]
  %v1237 = vld [vmem:[%s7 + $0x4] sm:$0xf]
  %v1238 = vld [vmem:[%s7 + $0x8] sm:$0xf]
  %v1239 = vld [vmem:[%s7 + $0xc] sm:$0xf]
  %v1240 = vld [vmem:[%s8] sm:$0x1]
  %v1242 = vlaneseq
  %v1243 = vshrl.u32 %v1242, 7
  %v1244 = vsub.s32 0, %v1243
  %v1245 = vrot.slane %v1240, %v1244
  %v1251 = vunpack.c.l.b16 %v1236
  %v1252 = vunpack.c.l.b16 %v1237
  %v1253 = vunpack.c.l.b16 %v1238
  %v1254 = vunpack.c.l.b16 %v1239
  %v1255 = vpack.c.b16 %v1252, %v1251
  %v1256 = vpack.c.b16 %v1254, %v1253
  %v1260 = vsel %vm143, %v1235, 0
  %1262 = vmatprep.subr.bf16.mxu0 0
  %1263 = vmatpush1.bf16.msra.mxu0 %v1255
  %1264 = vmatprep.subr.bf16.mxu0 0
  %1265 = vmatpush1.bf16.msra.mxu0 %v1256
  %1266 = vmatprep.subr.bf16.mxu0 0
  %1267 = vmatpush1.bf16.msra.mxu0 0
  %1268 = vmatprep.subr.bf16.mxu0 0
  %1269 = vmatpush1.bf16.msra.mxu0 0
  %1270 = vmatprep.subr.bf16.mxu0 0
  %1271 = vmatpush1.bf16.msra.mxu0 0
  %1272 = vmatprep.subr.bf16.mxu0 0
  %1273 = vmatpush1.bf16.msra.mxu0 0
  %1274 = vmatprep.subr.bf16.mxu0 0
  %1275 = vmatpush1.bf16.msra.mxu0 0
  %1276 = vmatprep.subr.bf16.mxu0 0
  %1277 = vmatpush1.bf16.msra.mxu0 0
  %1278 = vmatprep.subr.bf16.mxu0 0
  %1279 = vmatpush1.bf16.msra.mxu0 0
  %1280 = vmatprep.subr.bf16.mxu0 0
  %1281 = vmatpush1.bf16.msra.mxu0 0
  %1282 = vmatprep.subr.bf16.mxu0 0
  %1283 = vmatpush1.bf16.msra.mxu0 0
  %1284 = vmatprep.subr.bf16.mxu0 0
  %1285 = vmatpush1.bf16.msra.mxu0 0
  %1286 = vmatprep.subr.bf16.mxu0 0
  %1287 = vmatpush1.bf16.msra.mxu0 0
  %1288 = vmatprep.subr.bf16.mxu0 0
  %1289 = vmatpush1.bf16.msra.mxu0 0
  %1290 = vmatprep.subr.bf16.mxu0 0
  %1291 = vmatpush1.bf16.msra.mxu0 0
  %1292 = vmatprep.subr.bf16.mxu0 0
  %1293 = vmatpush1.bf16.msra.mxu0 0
  %1294 = vmatprep.mubr.bf16.mxu0 0
  %1295 = vmatmul.mubr.bf16.gmra.mrb[0].mxu0 %v1260
  %v1296 = vpop.f32.mrb[0].mxu0
  %v1297 = vadd.f32 %v1245, %v1296
  %v1298 = vpop.f32.mrb[0].mxu0
  %v1299 = vpop.f32.mrb[0].mxu0
  %v1300 = vadd.f32 %v1245, %v1299
  %v1301 = vpop.f32.mrb[0].mxu0
  %1302 = vdwg.mxu0
  %v1303 = vmax.f32 %v1297, 0.0
  %v1304 = vmax.f32 %v1300, 0.0
  %v1305 = vpack.c.bf16 %v1304, %v1303
  %v1306 = vld [vmem:[%s9] sm:$0xf]
  %v1307 = vld [vmem:[%s9 + $0x4] sm:$0xf]
  %v1308 = vld [vmem:[%s9 + $0x8] sm:$0xf]
  %v1309 = vld [vmem:[%s9 + $0xc] sm:$0xf]
  %v1310 = vld [vmem:[%s10] sm:$0x1]
  %v1312 = vlaneseq
  %v1313 = vshrl.u32 %v1312, 7
  %v1314 = vsub.s32 0, %v1313
  %v1315 = vrot.slane %v1310, %v1314
  %v1321 = vunpack.c.l.b16 %v1306
  %v1322 = vunpack.c.l.b16 %v1307
  %v1323 = vunpack.c.l.b16 %v1308
  %v1324 = vunpack.c.l.b16 %v1309
  %v1325 = vpack.c.b16 %v1322, %v1321
  %v1326 = vpack.c.b16 %v1324, %v1323
  %v1330 = vsel %vm143, %v1305, 0
  %1332 = vmatprep.subr.bf16.mxu0 0
  %1333 = vmatpush1.bf16.msra.mxu0 %v1325
  %1334 = vmatprep.subr.bf16.mxu0 0
  %1335 = vmatpush1.bf16.msra.mxu0 %v1326
  %1336 = vmatprep.subr.bf16.mxu0 0
  %1337 = vmatpush1.bf16.msra.mxu0 0
  %1338 = vmatprep.subr.bf16.mxu0 0
  %1339 = vmatpush1.bf16.msra.mxu0 0
  %1340 = vmatprep.subr.bf16.mxu0 0
  %1341 = vmatpush1.bf16.msra.mxu0 0
  %1342 = vmatprep.subr.bf16.mxu0 0
  %1343 = vmatpush1.bf16.msra.mxu0 0
  %1344 = vmatprep.subr.bf16.mxu0 0
  %1345 = vmatpush1.bf16.msra.mxu0 0
  %1346 = vmatprep.subr.bf16.mxu0 0
  %1347 = vmatpush1.bf16.msra.mxu0 0
  %1348 = vmatprep.subr.bf16.mxu0 0
  %1349 = vmatpush1.bf16.msra.mxu0 0
  %1350 = vmatprep.subr.bf16.mxu0 0
  %1351 = vmatpush1.bf16.msra.mxu0 0
  %1352 = vmatprep.subr.bf16.mxu0 0
  %1353 = vmatpush1.bf16.msra.mxu0 0
  %1354 = vmatprep.subr.bf16.mxu0 0
  %1355 = vmatpush1.bf16.msra.mxu0 0
  %1356 = vmatprep.subr.bf16.mxu0 0
  %1357 = vmatpush1.bf16.msra.mxu0 0
  %1358 = vmatprep.subr.bf16.mxu0 0
  %1359 = vmatpush1.bf16.msra.mxu0 0
  %1360 = vmatprep.subr.bf16.mxu0 0
  %1361 = vmatpush1.bf16.msra.mxu0 0
  %1362 = vmatprep.subr.bf16.mxu0 0
  %1363 = vmatpush1.bf16.msra.mxu0 0
  %1364 = vmatprep.mubr.bf16.mxu0 0
  %1365 = vmatmul.mubr.bf16.gmra.mrb[0].mxu0 %v1330
  %v1366 = vpop.f32.mrb[0].mxu0
  %v1367 = vadd.f32 %v1315, %v1366
  %v1368 = vpop.f32.mrb[0].mxu0
  %v1369 = vpop.f32.mrb[0].mxu0
  %v1370 = vadd.f32 %v1315, %v1369
  %v1371 = vpop.f32.mrb[0].mxu0
  %1372 = vdwg.mxu0
  %v1375 = vcombine.high %v1367, %v1367
  %v1377 = vunpack.c.l.s4 1983009808
  %v1378 = vunpack.c.0.s8 %v1377
  %v1379 = vlaneseq
  %v1380 = vshrl.u32 %v1379, 7
  %v1381 = vsub.s32 %v1378, %v1380
  %v1382 = vrot.slane %v1367, %v1381
  %v1384 = vunpack.c.l.s4 1983009808
  %v1385 = vunpack.c.0.s8 %v1384
  %v1386 = vlaneseq
  %v1387 = vshrl.u32 %v1386, 7
  %v1388 = vsub.s32 %v1385, %v1387
  %v1389 = vrot.slane %v1375, %v1388
  %v1390 = vcombine.high %v1382, %v1382
  %v1391 = vcombine.high %v1389, %v1389
  %v1392 = vcombine.high %v1370, %v1370
  %v1394 = vunpack.c.l.s4 1983009808
  %v1395 = vunpack.c.0.s8 %v1394
  %v1396 = vlaneseq
  %v1397 = vshrl.u32 %v1396, 7
  %v1398 = vsub.s32 %v1395, %v1397
  %v1399 = vrot.slane %v1370, %v1398
  %v1401 = vunpack.c.l.s4 1983009808
  %v1402 = vunpack.c.0.s8 %v1401
  %v1403 = vlaneseq
  %v1404 = vshrl.u32 %v1403, 7
  %v1405 = vsub.s32 %v1402, %v1404
  %v1406 = vrot.slane %v1392, %v1405
  %v1407 = vcombine.high %v1399, %v1399
  %v1408 = vcombine.high %v1406, %v1406
  %v1417 = vmul.f32 %v1382, 0.5
  %v1418 = vmul.f32 %v1390, 0.5
  %v1419 = vmul.f32 %v1389, 0.5
  %v1420 = vmul.f32 %v1391, 0.5
  %v1421 = vmul.f32 %v1399, 0.5
  %v1422 = vmul.f32 %v1407, 0.5
  %v1423 = vmul.f32 %v1406, 0.5
  %v1424 = vmul.f32 %v1408, 0.5
  %v1425 = vld [vmem:[%s1] sm:$0x3]
  %v1426 = vld [vmem:[%s1 + $0x2] sm:$0x3]
  %v1427 = vld [vmem:[%s1 + $0x4] sm:$0x3]
  %v1428 = vld [vmem:[%s1 + $0x6] sm:$0x3]
  %v1429 = vld [vmem:[%s1 + $0x8] sm:$0x3]
  %v1430 = vld [vmem:[%s1 + $0xa] sm:$0x3]
  %v1431 = vld [vmem:[%s1 + $0xc] sm:$0x3]
  %v1432 = vld [vmem:[%s1 + $0xe] sm:$0x3]
  %1434 = vset.pattern.permute.xlu0 0
  %1435 = vperm.xlu0 %1434, %v1425
  %v1436 = vpop.permute.xlu0 %1435
  %1439 = vset.pattern.permute.xlu0 0
  %1440 = vperm.xlu0 %1439, %v1426
  %v1441 = vpop.permute.xlu0 %1440
  %1444 = vset.pattern.permute.xlu0 0
  %1445 = vperm.xlu0 %1444, %v1427
  %v1446 = vpop.permute.xlu0 %1445
  %1449 = vset.pattern.permute.xlu0 0
  %1450 = vperm.xlu0 %1449, %v1428
  %v1451 = vpop.permute.xlu0 %1450
  %1454 = vset.pattern.permute.xlu0 0
  %1455 = vperm.xlu0 %1454, %v1429
  %v1456 = vpop.permute.xlu0 %1455
  %1459 = vset.pattern.permute.xlu0 0
  %1460 = vperm.xlu0 %1459, %v1430
  %v1461 = vpop.permute.xlu0 %1460
  %1464 = vset.pattern.permute.xlu0 0
  %1465 = vperm.xlu0 %1464, %v1431
  %v1466 = vpop.permute.xlu0 %1465
  %1469 = vset.pattern.permute.xlu0 0
  %1470 = vperm.xlu0 %1469, %v1432
  %v1471 = vpop.permute.xlu0 %1470
  %v1473 = vadd.f32 %v1417, %v1436
  %v1474 = vadd.f32 %v1418, %v1441
  %v1475 = vadd.f32 %v1419, %v1446
  %v1476 = vadd.f32 %v1420, %v1451
  %v1477 = vadd.f32 %v1421, %v1456
  %v1478 = vadd.f32 %v1422, %v1461
  %v1479 = vadd.f32 %v1423, %v1466
  %v1480 = vadd.f32 %v1424, %v1471
  %vm1481 = vcmask 25600
  %1482 = vst.msk [vmem:[%s11] sm:$0x3] %vm1481, %v1473
  %1483 = vst.msk [vmem:[%s11 + $0x2] sm:$0x3] %vm1481, %v1474
  %1484 = vst.msk [vmem:[%s11 + $0x4] sm:$0x3] %vm1481, %v1475
  %1485 = vst.msk [vmem:[%s11 + $0x6] sm:$0x3] %vm1481, %v1476
  %1486 = vst.msk [vmem:[%s11 + $0x8] sm:$0x3] %vm1481, %v1477
  %1487 = vst.msk [vmem:[%s11 + $0xa] sm:$0x3] %vm1481, %v1478
  %1488 = vst.msk [vmem:[%s11 + $0xc] sm:$0x3] %vm1481, %v1479
  %1489 = vst.msk [vmem:[%s11 + $0xe] sm:$0x3] %vm1481, %v1480
  // Predicated region
  $region50: #{tpu_custom_call.1} parent=0 // pred_check
    _
  $region51: #{tpu_custom_call.1} parent=0 // pred_check_branch
    %1491 = sbr.rel (0) target = $region53
  $region52: #{tpu_custom_call.1} parent=0 // pred_region
    _
  $region53: #{tpu_custom_call.1} parent=0 // pred_fallthru
    _
  // Predicated region
  $region54: #{tpu_custom_call.1} parent=0 // pred_check
    _
  $region55: #{tpu_custom_call.1} parent=0 // pred_check_branch
    %1493 = sbr.rel (0) target = $region57
  $region56: #{tpu_custom_call.1} parent=0 // pred_region
    _
  $region57: #{tpu_custom_call.1} parent=0 // pred_fallthru
    _

</llo_original>
